<compile_context>
chip_gen: v7x
topology: tpu7x:2x2x1
jax: 0.10.0
libtpu: 0.0.40
codegen_flags: <defaults>
</compile_context>

<pallas_src>
import math
from functools import partial

import jax
import jax.numpy as jnp
from jax import lax
from jax.experimental import pallas as pl
from jax.experimental.pallas import tpu as pltpu

SELU_ALPHA = 1.6732632423543772
SELU_SCALE = 1.0507009873554805


def _selu(x):
    return SELU_SCALE * jnp.where(x > 0, x, SELU_ALPHA * (jnp.exp(x) - 1.0))


def _softmax_lastdim(x, *, approx):
    m = jnp.max(x, axis=-1, keepdims=True)
    e = jnp.exp(x - m)
    s = jnp.sum(e, axis=-1, keepdims=True)
    if approx:
        # EUP vrcp co-issues with VPU work; fine for the internal softmax.
        return e * pl.reciprocal(s, approx=True)
    # Exact normalization for the user-visible attention weights.
    return e / s


def _attention_kernel(x_ref, w1_ref, w2_ref, w3_ref, b_ref, out_ref, attn_ref,
                      *, d_model, seq, tb):
    D = d_model
    cdt = w1_ref.dtype                                   # bf16 MXU compute dtype

    # x arrives in its source dtype (f32); cast to the MXU dtype on the VPU here
    # instead of a standalone (un-hidden) XLA cast pass in the wrapper.
    x = x_ref[...].astype(cdt)                           # (TB*S, D)

    # ---- fused Q|K|V 3-layer MLP over all TB*S rows at once -------------------
    # TODO(synk): at production D (>=128) split q/k/v right after layer 1 and use
    # per-branch (D,D) dots (or a batched (3,rows,D)x(3,D,D) dot_general); the
    # block-diagonal layers below are only free while 3D <= one 128-lane tile.
    w1 = w1_ref[...]                                     # (D, 3D)    bf16
    w2 = w2_ref[...]                                     # (3D, 3D)   bf16 block-diag
    w3 = w3_ref[...]                                     # (3D, 3D)   bf16 block-diag
    b1 = b_ref[0].astype(jnp.float32)                    # (1, 3D)
    b2 = b_ref[1].astype(jnp.float32)
    b3 = b_ref[2].astype(jnp.float32)

    h = jnp.dot(x, w1, preferred_element_type=jnp.float32) + b1
    h = _selu(h).astype(cdt)
    h = jnp.dot(h, w2, preferred_element_type=jnp.float32) + b2
    h = _selu(h).astype(cdt)
    qkv = jnp.dot(h, w3, preferred_element_type=jnp.float32) + b3   # (TB*S, 3D) f32

    # Single lane split of qkv into the three branches.
    q = qkv[:, 0 * D:1 * D].astype(cdt).reshape(tb, seq, D)
    k = qkv[:, 1 * D:2 * D].astype(cdt).reshape(tb, seq, D)
    v = qkv[:, 2 * D:3 * D].reshape(tb, seq, D)          # keep f32 for the epilogue

    # ---- scaled_dot_product_attention (batched NT contraction, no k.T) --------
    # TODO(synk): mask=None path only; a mask would add masked_fill(-1e9) on scores.
    # TODO(synk): flash-style K-tiling of the (S,S) logits before scaling S (v7x).
    logits = lax.dot_general(
        q, k,
        dimension_numbers=(((2,), (2,)), ((0,), (0,))),
        preferred_element_type=jnp.float32) * (1.0 / math.sqrt(D))  # (TB, S, S)
    p = _softmax_lastdim(logits, approx=True)                       # f32
    sdpa = lax.dot_general(
        p.astype(cdt), v.astype(cdt),
        dimension_numbers=(((2,), (1,)), ((0,), (0,))),
        preferred_element_type=jnp.float32)                         # (TB, S, D)

    # ---- extra softmax over SDPA output + elementwise * V (module semantics) --
    attn_w = _softmax_lastdim(sdpa, approx=False)                   # (TB, S, D) f32
    out = attn_w * v

    # Lane-dense stores: fold (S, D) -> S*D (=256, multiple of 128) so both
    # outputs are written with full unmasked vst + dense output DMAs instead of
    # masked 32-lane partial stores.
    out_ref[...] = out.reshape(tb, seq * D).astype(out_ref.dtype)
    attn_ref[...] = attn_w.reshape(tb, seq * D).astype(attn_ref.dtype)


def _pack_params(weights, biases, compute_dtype):
    """weights: (9, D, D) ordered [q1,q2,q3, k1,k2,k3, v1,v2,v3]; biases: (9, 1, D)."""
    D = weights.shape[-1]

    def blockdiag(a, b, c):
        z = jnp.zeros((D, D), dtype=a.dtype)
        return jnp.concatenate([
            jnp.concatenate([a, z, z], axis=1),
            jnp.concatenate([z, b, z], axis=1),
            jnp.concatenate([z, z, c], axis=1)], axis=0)            # (3D, 3D)

    w1 = jnp.concatenate([weights[0], weights[3], weights[6]], axis=1)   # (D, 3D)
    w2 = blockdiag(weights[1], weights[4], weights[7])
    w3 = blockdiag(weights[2], weights[5], weights[8])

    b1 = jnp.concatenate([biases[0], biases[3], biases[6]], axis=-1)     # (1, 3D)
    b2 = jnp.concatenate([biases[1], biases[4], biases[7]], axis=-1)
    b3 = jnp.concatenate([biases[2], biases[5], biases[8]], axis=-1)
    b = jnp.stack([b1, b2, b3], axis=0).astype(jnp.float32)              # (3, 1, 3D)

    return (w1.astype(compute_dtype), w2.astype(compute_dtype),
            w3.astype(compute_dtype), b)


def _num_tensorcores_per_chip():
    """Best-effort query of TensorCores per chip (2 on v7x, 1 on v5e/v6e)."""
    try:
        info = pltpu.get_tpu_info()
        for attr in ("tensorcores_per_chip", "num_tensorcores",
                     "tensorcore_count", "cores_per_chip"):
            val = getattr(info, attr, None)
            if isinstance(val, int) and val >= 1:
                return val
    except Exception:
        pass
    try:
        kind = jax.devices()[0].device_kind.lower()
        if "v7" in kind or "7x" in kind:
            return 2
    except Exception:
        pass
    return 1


def _choose_tb(batch, seq, d_model):
    """Pick batch-elements-per-grid-step.

    Single-TC chips (v5e/v6e): one grid step (tb = batch) feeds the MXU the most
    rows and avoids the ~0.35us/step pipeline overhead.  Multi-TC chips (v7x):
    keep an even number of grid steps so both cores get equal work, while keeping
    the output row-block sublane-aligned (tb % 8 == 0) for dense stores.
    """
    n_tc = _num_tensorcores_per_chip()
    # Rough per-batch-element f32 working set (qkv, (S,S) logits, v, outputs).
    per_elem = 4 * seq * (seq + 4 * 3 * d_model) + 512
    vmem_budget = 8 << 20                      # conservative slice of scoped VMEM
    tb_cap = max(1, min(batch, vmem_budget // max(per_elem, 1)))

    def ok(tb):
        if batch % tb:
            return False
        if tb != batch and tb % 8:             # sublane-aligned output row blocks
            return False
        if n_tc > 1 and (batch // tb) % n_tc:  # even work split across TCs
            return False
        return True

    target = tb_cap if n_tc <= 1 else min(tb_cap, max(1, batch // n_tc))
    for tb in range(target, 0, -1):
        if ok(tb):
            return tb
    return batch                                # tiny batches: fall back to 1 step


def lazy_self_attention(x, weights, biases, *, tb=None, compute_dtype=jnp.bfloat16):
    """x: (B, S, D).  weights: (9, D, D) [q1,q2,q3,k1,k2,k3,v1,v2,v3].  biases: (9, 1, D)."""
    B, S, D = x.shape
    out_dtype = x.dtype
    if tb is None:
        tb = _choose_tb(B, S, D)
    tb = max(1, min(tb, B))
    while B % tb:
        tb -= 1

    w1, w2, w3, b = _pack_params(weights, biases, compute_dtype)
    x_rows = x.reshape(B * S, D)               # f32; the kernel casts to bf16 in-VMEM

    kernel = partial(_attention_kernel, d_model=D, seq=S, tb=tb)
    grid = (B // tb,)

    # Advisory cost estimate so XLA can overlap neighbouring ops with the call.
    rows = B * S
    w_bytes = (D * 3 * D + 2 * 9 * D * D) * jnp.dtype(compute_dtype).itemsize
    cost = pl.CostEstimate(
        flops=2 * rows * (3 * D * D + 2 * 9 * D * D) + 4 * B * S * S * D,
        transcendentals=2 * rows * 3 * D + B * S * S + B * S * D,
        bytes_accessed=(rows * D * x.dtype.itemsize + w_bytes + 9 * D * 4
                        + 2 * B * S * D * jnp.dtype(out_dtype).itemsize),
    )

    out2d, attn2d = pl.pallas_call(
        kernel,
        out_shape=(
            jax.ShapeDtypeStruct((B, S * D), out_dtype),   # lane-dense (S*D = mult of 128)
            jax.ShapeDtypeStruct((B, S * D), out_dtype),
        ),
        grid_spec=pltpu.PrefetchScalarGridSpec(
            num_scalar_prefetch=0,
            grid=grid,
            in_specs=[
                pl.BlockSpec((tb * S, D), lambda i: (i, 0)),       # x rows (f32)
                # Grid-invariant weights/biases: constant index_map -> no re-DMA.
                # TODO(synk): at production D single-buffer these operands
                # (pipeline_mode=pl.Buffered(1)) to halve weight VMEM on v7x.
                pl.BlockSpec((D, 3 * D), lambda i: (0, 0)),        # W1
                pl.BlockSpec((3 * D, 3 * D), lambda i: (0, 0)),    # W2
                pl.BlockSpec((3 * D, 3 * D), lambda i: (0, 0)),    # W3
                pl.BlockSpec((3, 1, 3 * D), lambda i: (0, 0, 0)),  # biases
            ],
            out_specs=[
                pl.BlockSpec((tb, S * D), lambda i: (i, 0)),       # out  (lane-dense)
                pl.BlockSpec((tb, S * D), lambda i: (i, 0)),       # attn (lane-dense)
            ],
        ),
        compiler_params=pltpu.CompilerParams(
            dimension_semantics=("parallel",)),
        cost_estimate=cost,
    )(x_rows, w1, w2, w3, b)

    return out2d.reshape(B, S, D), attn2d.reshape(B, S, D)


def _reference(x, weights, biases):
    """Pure-JAX f32 reference for validation."""
    def mlp(xb, base):
        h = _selu(xb @ weights[base] + biases[base])
        h = _selu(h @ weights[base + 1] + biases[base + 1])
        return h @ weights[base + 2] + biases[base + 2]

    D = x.shape[-1]
    q = mlp(x, 0)
    k = mlp(x, 3)
    v = mlp(x, 6)
    logits = jnp.einsum("bqd,bkd->bqk", q, k) / math.sqrt(D)
    p = jax.nn.softmax(logits, axis=-1)
    sdpa = jnp.einsum("bqk,bkd->bqd", p, v)
    attn_w = jax.nn.softmax(sdpa, axis=-1)
    return attn_w * v, attn_w


if __name__ == "__main__":
    B, S, D = 8, 8, 32

    key = jax.random.PRNGKey(0)
    kx, kw, kb = jax.random.split(key, 3)
    x = jax.random.normal(kx, (B, S, D), dtype=jnp.float32)

    # Deterministic parameter init (Kaiming-uniform-ish bound, like nn.Linear).
    bound = 1.0 / math.sqrt(D)
    weights = jax.random.uniform(kw, (9, D, D), jnp.float32, -bound, bound)
    biases = jax.random.uniform(kb, (9, 1, D), jnp.float32, -bound, bound)

    out, attn = lazy_self_attention(x, weights, biases)
    jax.block_until_ready((out, attn))

    out_ref, attn_ref = _reference(x, weights, biases)
    # bf16 MXU operands + approx inner-softmax reciprocal -> validate against the
    # pure f32 reference with a bf16-appropriate tolerance.
    assert jnp.allclose(out, out_ref, atol=3e-2, rtol=3e-2), \
        float(jnp.max(jnp.abs(out - out_ref)))
    assert jnp.allclose(attn, attn_ref, atol=3e-2, rtol=3e-2), \
        float(jnp.max(jnp.abs(attn - attn_ref)))
    # Final softmax uses exact normalization: attention-weight rows sum to 1.
    assert jnp.allclose(jnp.sum(attn, axis=-1), 1.0, atol=1e-3)

    print("KERNEL_OK")
</pallas_src>

<mosaic_0001>
module attributes {stable_mosaic.version = 11 : i64} {
  func.func @_attention_kernel(%arg0: i32, %arg1: memref<64x32xf32, #tpu.memory_space<vmem>>, %arg2: memref<32x96xbf16, #tpu.memory_space<vmem>>, %arg3: memref<96x96xbf16, #tpu.memory_space<vmem>>, %arg4: memref<96x96xbf16, #tpu.memory_space<vmem>>, %arg5: memref<3x1x96xf32, #tpu.memory_space<vmem>>, %arg6: memref<8x256xf32, #tpu.memory_space<vmem>>, %arg7: memref<8x256xf32, #tpu.memory_space<vmem>>) attributes {dimension_semantics = [#tpu.dimension_semantics<parallel>], iteration_bounds = array<i64: 1>, scalar_prefetch = 0 : i64, scratch_operands = 0 : i64, tpu.core_type = #tpu.core_type<tc>, window_params = [{transform_indices = @transform_0, window_bounds = array<i64: 64, 32>}, {pipeline_mode = #tpu.pipeline_mode<synchronous>, transform_indices = @transform_1, window_bounds = array<i64: 32, 96>}, {pipeline_mode = #tpu.pipeline_mode<synchronous>, transform_indices = @transform_2, window_bounds = array<i64: 96, 96>}, {pipeline_mode = #tpu.pipeline_mode<synchronous>, transform_indices = @transform_3, window_bounds = array<i64: 96, 96>}, {pipeline_mode = #tpu.pipeline_mode<synchronous>, transform_indices = @transform_4, window_bounds = array<i64: 3, 1, 96>}, {transform_indices = @transform_5, window_bounds = array<i64: 8, 256>}, {transform_indices = @transform_6, window_bounds = array<i64: 8, 256>}]} {
    %c0 = arith.constant 0 : index
    %c0_0 = arith.constant 0 : index
    %0 = vector.load %arg1[%c0, %c0_0] : memref<64x32xf32, #tpu.memory_space<vmem>>, vector<64x32xf32>
    %1 = arith.truncf %0 : vector<64x32xf32> to vector<64x32xbf16>
    %c0_1 = arith.constant 0 : index
    %c0_2 = arith.constant 0 : index
    %2 = vector.load %arg2[%c0_1, %c0_2] : memref<32x96xbf16, #tpu.memory_space<vmem>>, vector<32x96xbf16>
    %c0_3 = arith.constant 0 : index
    %c0_4 = arith.constant 0 : index
    %3 = vector.load %arg3[%c0_3, %c0_4] : memref<96x96xbf16, #tpu.memory_space<vmem>>, vector<96x96xbf16>
    %c0_5 = arith.constant 0 : index
    %c0_6 = arith.constant 0 : index
    %4 = vector.load %arg4[%c0_5, %c0_6] : memref<96x96xbf16, #tpu.memory_space<vmem>>, vector<96x96xbf16>
    %c0_7 = arith.constant 0 : index
    %c0_8 = arith.constant 0 : index
    %c0_9 = arith.constant 0 : index
    %5 = vector.load %arg5[%c0_7, %c0_8, %c0_9] : memref<3x1x96xf32, #tpu.memory_space<vmem>>, vector<1x1x96xf32>
    %6 = vector.shape_cast %5 : vector<1x1x96xf32> to vector<1x96xf32>
    %c1 = arith.constant 1 : index
    %c0_10 = arith.constant 0 : index
    %c0_11 = arith.constant 0 : index
    %7 = vector.load %arg5[%c1, %c0_10, %c0_11] : memref<3x1x96xf32, #tpu.memory_space<vmem>>, vector<1x1x96xf32>
    %8 = vector.shape_cast %7 : vector<1x1x96xf32> to vector<1x96xf32>
    %c2 = arith.constant 2 : index
    %c0_12 = arith.constant 0 : index
    %c0_13 = arith.constant 0 : index
    %9 = vector.load %arg5[%c2, %c0_12, %c0_13] : memref<3x1x96xf32, #tpu.memory_space<vmem>>, vector<1x1x96xf32>
    %10 = vector.shape_cast %9 : vector<1x1x96xf32> to vector<1x96xf32>
    %cst = arith.constant dense<0.000000e+00> : vector<64x96xf32>
    %11 = tpu.matmul %1, %2, %cst {dimension_numbers = #tpu.dot_dimension_numbers<[1], [0], [0], [1], [0, 0, 1, 1], [], []>} : vector<64x32xbf16>, vector<32x96xbf16>, vector<64x96xf32> -> vector<64x96xf32>
    %12 = vector.broadcast %6 : vector<1x96xf32> to vector<64x96xf32>
    %13 = arith.addf %11, %12 : vector<64x96xf32>
    %cst_14 = arith.constant 0.000000e+00 : f32
    %14 = vector.broadcast %cst_14 : f32 to vector<64x96xf32>
    %15 = arith.cmpf ogt, %13, %14 : vector<64x96xf32>
    %16 = math.exp %13 : vector<64x96xf32>
    %cst_15 = arith.constant 1.000000e+00 : f32
    %17 = vector.broadcast %cst_15 : f32 to vector<64x96xf32>
    %18 = arith.subf %16, %17 : vector<64x96xf32>
    %cst_16 = arith.constant 1.67326319 : f32
    %19 = vector.broadcast %cst_16 : f32 to vector<64x96xf32>
    %20 = arith.mulf %19, %18 : vector<64x96xf32>
    %21 = arith.select %15, %13, %20 : vector<64x96xi1>, vector<64x96xf32>
    %cst_17 = arith.constant 1.05070102 : f32
    %22 = vector.broadcast %cst_17 : f32 to vector<64x96xf32>
    %23 = arith.mulf %22, %21 : vector<64x96xf32>
    %24 = arith.truncf %23 : vector<64x96xf32> to vector<64x96xbf16>
    %cst_18 = arith.constant dense<0.000000e+00> : vector<64x96xf32>
    %25 = tpu.matmul %24, %3, %cst_18 {dimension_numbers = #tpu.dot_dimension_numbers<[1], [0], [0], [1], [0, 0, 1, 1], [], []>} : vector<64x96xbf16>, vector<96x96xbf16>, vector<64x96xf32> -> vector<64x96xf32>
    %26 = vector.broadcast %8 : vector<1x96xf32> to vector<64x96xf32>
    %27 = arith.addf %25, %26 : vector<64x96xf32>
    %cst_19 = arith.constant 0.000000e+00 : f32
    %28 = vector.broadcast %cst_19 : f32 to vector<64x96xf32>
    %29 = arith.cmpf ogt, %27, %28 : vector<64x96xf32>
    %30 = math.exp %27 : vector<64x96xf32>
    %cst_20 = arith.constant 1.000000e+00 : f32
    %31 = vector.broadcast %cst_20 : f32 to vector<64x96xf32>
    %32 = arith.subf %30, %31 : vector<64x96xf32>
    %cst_21 = arith.constant 1.67326319 : f32
    %33 = vector.broadcast %cst_21 : f32 to vector<64x96xf32>
    %34 = arith.mulf %33, %32 : vector<64x96xf32>
    %35 = arith.select %29, %27, %34 : vector<64x96xi1>, vector<64x96xf32>
    %cst_22 = arith.constant 1.05070102 : f32
    %36 = vector.broadcast %cst_22 : f32 to vector<64x96xf32>
    %37 = arith.mulf %36, %35 : vector<64x96xf32>
    %38 = arith.truncf %37 : vector<64x96xf32> to vector<64x96xbf16>
    %cst_23 = arith.constant dense<0.000000e+00> : vector<64x96xf32>
    %39 = tpu.matmul %38, %4, %cst_23 {dimension_numbers = #tpu.dot_dimension_numbers<[1], [0], [0], [1], [0, 0, 1, 1], [], []>} : vector<64x96xbf16>, vector<96x96xbf16>, vector<64x96xf32> -> vector<64x96xf32>
    %40 = vector.broadcast %10 : vector<1x96xf32> to vector<64x96xf32>
    %41 = arith.addf %39, %40 : vector<64x96xf32>
    %42 = vector.extract_strided_slice %41 {offsets = [0, 0], sizes = [64, 32], strides = [1, 1]} : vector<64x96xf32> to vector<64x32xf32>
    %43 = arith.truncf %42 : vector<64x32xf32> to vector<64x32xbf16>
    %44 = vector.shape_cast %43 : vector<64x32xbf16> to vector<8x8x32xbf16>
    %45 = vector.extract_strided_slice %41 {offsets = [0, 32], sizes = [64, 32], strides = [1, 1]} : vector<64x96xf32> to vector<64x32xf32>
    %46 = arith.truncf %45 : vector<64x32xf32> to vector<64x32xbf16>
    %47 = vector.shape_cast %46 : vector<64x32xbf16> to vector<8x8x32xbf16>
    %48 = vector.extract_strided_slice %41 {offsets = [0, 64], sizes = [64, 32], strides = [1, 1]} : vector<64x96xf32> to vector<64x32xf32>
    %49 = vector.shape_cast %48 : vector<64x32xf32> to vector<8x8x32xf32>
    %cst_24 = arith.constant dense<0.000000e+00> : vector<8x8x8xf32>
    %50 = tpu.matmul %44, %47, %cst_24 {dimension_numbers = #tpu.dot_dimension_numbers<[2], [2], [1], [1], [0, 0, 0, 1, 1, 1], [0], [0]>} : vector<8x8x32xbf16>, vector<8x8x32xbf16>, vector<8x8x8xf32> -> vector<8x8x8xf32>
    %cst_25 = arith.constant 0.176776692 : f32
    %51 = vector.broadcast %cst_25 : f32 to vector<8x8x8xf32>
    %52 = arith.mulf %50, %51 : vector<8x8x8xf32>
    %cst_26 = arith.constant dense<0xFF800000> : vector<8x8xf32>
    %53 = vector.multi_reduction <maximumf>, %52, %cst_26 [2] : vector<8x8x8xf32> to vector<8x8xf32>
    %54 = vector.shape_cast %53 : vector<8x8xf32> to vector<8x8x1xf32>
    %55 = vector.broadcast %54 : vector<8x8x1xf32> to vector<8x8x8xf32>
    %56 = arith.subf %52, %55 : vector<8x8x8xf32>
    %57 = math.exp %56 : vector<8x8x8xf32>
    %cst_27 = arith.constant dense<0.000000e+00> : vector<8x8xf32>
    %58 = vector.multi_reduction <add>, %57, %cst_27 [2] : vector<8x8x8xf32> to vector<8x8xf32>
    %59 = vector.shape_cast %58 : vector<8x8xf32> to vector<8x8x1xf32>
    %60 = tpu.reciprocal %59 {approx = true} : vector<8x8x1xf32> -> vector<8x8x1xf32>
    %61 = vector.broadcast %60 : vector<8x8x1xf32> to vector<8x8x8xf32>
    %62 = arith.mulf %57, %61 : vector<8x8x8xf32>
    %63 = arith.truncf %62 : vector<8x8x8xf32> to vector<8x8x8xbf16>
    %64 = arith.truncf %49 : vector<8x8x32xf32> to vector<8x8x32xbf16>
    %cst_28 = arith.constant dense<0.000000e+00> : vector<8x8x32xf32>
    %65 = tpu.matmul %63, %64, %cst_28 {dimension_numbers = #tpu.dot_dimension_numbers<[2], [1], [1], [2], [0, 0, 0, 1, 1, 2], [0], [0]>} : vector<8x8x8xbf16>, vector<8x8x32xbf16>, vector<8x8x32xf32> -> vector<8x8x32xf32>
    %cst_29 = arith.constant dense<0xFF800000> : vector<8x8xf32>
    %66 = vector.multi_reduction <maximumf>, %65, %cst_29 [2] : vector<8x8x32xf32> to vector<8x8xf32>
    %67 = vector.shape_cast %66 : vector<8x8xf32> to vector<8x8x1xf32>
    %68 = vector.broadcast %67 : vector<8x8x1xf32> to vector<8x8x32xf32>
    %69 = arith.subf %65, %68 : vector<8x8x32xf32>
    %70 = math.exp %69 : vector<8x8x32xf32>
    %cst_30 = arith.constant dense<0.000000e+00> : vector<8x8xf32>
    %71 = vector.multi_reduction <add>, %70, %cst_30 [2] : vector<8x8x32xf32> to vector<8x8xf32>
    %72 = vector.shape_cast %71 : vector<8x8xf32> to vector<8x8x1xf32>
    %73 = vector.broadcast %72 : vector<8x8x1xf32> to vector<8x8x32xf32>
    %74 = arith.divf %70, %73 : vector<8x8x32xf32>
    %75 = arith.mulf %74, %49 : vector<8x8x32xf32>
    %76 = vector.shape_cast %75 : vector<8x8x32xf32> to vector<8x256xf32>
    %c0_31 = arith.constant 0 : index
    %c0_32 = arith.constant 0 : index
    %77 = vector.load %arg6[%c0_31, %c0_32] : memref<8x256xf32, #tpu.memory_space<vmem>>, vector<8x256xf32>
    tpu.vector_store %arg6[%c0_31, %c0_32], %76 {strides = array<i32>} : memref<8x256xf32, #tpu.memory_space<vmem>>, vector<8x256xf32>,
    %78 = vector.shape_cast %74 : vector<8x8x32xf32> to vector<8x256xf32>
    %c0_33 = arith.constant 0 : index
    %c0_34 = arith.constant 0 : index
    %79 = vector.load %arg7[%c0_33, %c0_34] : memref<8x256xf32, #tpu.memory_space<vmem>>, vector<8x256xf32>
    tpu.vector_store %arg7[%c0_33, %c0_34], %78 {strides = array<i32>} : memref<8x256xf32, #tpu.memory_space<vmem>>, vector<8x256xf32>,
    return
  }
  func.func @transform_0(%arg0: i32) -> (i32, i32) {
    %c0_i32 = arith.constant 0 : i32
    %c0_i32_0 = arith.constant 0 : i32
    return %arg0, %c0_i32 : i32, i32
  }
  func.func @transform_1(%arg0: i32) -> (i32, i32) {
    %c0_i32 = arith.constant 0 : i32
    %c0_i32_0 = arith.constant 0 : i32
    %c0_i32_1 = arith.constant 0 : i32
    return %c0_i32, %c0_i32_0 : i32, i32
  }
  func.func @transform_2(%arg0: i32) -> (i32, i32) {
    %c0_i32 = arith.constant 0 : i32
    %c0_i32_0 = arith.constant 0 : i32
    %c0_i32_1 = arith.constant 0 : i32
    return %c0_i32, %c0_i32_0 : i32, i32
  }
  func.func @transform_3(%arg0: i32) -> (i32, i32) {
    %c0_i32 = arith.constant 0 : i32
    %c0_i32_0 = arith.constant 0 : i32
    %c0_i32_1 = arith.constant 0 : i32
    return %c0_i32, %c0_i32_0 : i32, i32
  }
  func.func @transform_4(%arg0: i32) -> (i32, i32, i32) {
    %c0_i32 = arith.constant 0 : i32
    %c0_i32_0 = arith.constant 0 : i32
    %c0_i32_1 = arith.constant 0 : i32
    %c0_i32_2 = arith.constant 0 : i32
    return %c0_i32, %c0_i32_0, %c0_i32_1 : i32, i32, i32
  }
  func.func @transform_5(%arg0: i32) -> (i32, i32) {
    %c0_i32 = arith.constant 0 : i32
    %c0_i32_0 = arith.constant 0 : i32
    return %arg0, %c0_i32 : i32, i32
  }
  func.func @transform_6(%arg0: i32) -> (i32, i32) {
    %c0_i32 = arith.constant 0 : i32
    %c0_i32_0 = arith.constant 0 : i32
    return %arg0, %c0_i32 : i32, i32
  }
}

</mosaic_0001>

<llo_original>
// kernel: tpu_custom_call.1
$region0: #{tpu_custom_call.1}
  #allocation0 [shape = 'u32[]', space=smem, size = 0x4, offset = 0x4, fixed_abs, tag = 'smem constant byte address 0x4 - core index']
  #allocation1 [shape = 'u32[144,128]{1,0:T(1,128)}', space=vmem, size = 0x12000, scoped, tag = 'internal scratch']
  %s0 = inlined_call_operand.vmem [shape: f32[64,32], index: 0, kind: input, shape index: {}]
  %s1 = inlined_call_operand.hbm [shape: bf16[32,96], index: 1, kind: input, shape index: {}]
  %s2 = inlined_call_operand.vmem [shape: bf16[96,96], index: 2, kind: input, shape index: {}]
  %s3 = inlined_call_operand.vmem [shape: bf16[96,96], index: 3, kind: input, shape index: {}]
  %s4 = inlined_call_operand.vmem [shape: f32[3,1,96], index: 4, kind: input, shape index: {}]
  %s5 = inlined_call_operand.hbm [shape: f32[8,256], index: 5, kind: output, shape index: {0}]
  %s6 = inlined_call_operand.hbm [shape: f32[8,256], index: 6, kind: output, shape index: {1}]
  %7 = xla_tuple %s5, %s6
  %s8 = sld [smem:[#allocation0]]
  $region42: #{tpu_custom_call.1} parent=0
    _
  %s10 = ssub.s32 1, %s8
  %s11 = scalar_select 0, %s10, %s8
  $region1: #{tpu_custom_call.1} parent=0
    #allocation2 [shape = 'u8[8192]{0}', space=vmem, size = 0x2000, scoped, tag = 'input window, operand 1, single buffered']
    #allocation3 [shape = 's32[1]{0}', space=sflag, size = 0x4, scoped, tag = 'scoped memory for tpu_custom_call.1']
    #allocation4 [shape = 's32[1]{0}', space=sflag, size = 0x4, scoped, tag = 'scoped memory for tpu_custom_call.1']
    #allocation5 [shape = 'u8[8192]{0}', space=vmem, size = 0x2000, scoped, tag = 'output window, operand 0, single buffered']
    #allocation6 [shape = 'u8[8192]{0}', space=vmem, size = 0x2000, scoped, tag = 'output window, operand 1, single buffered']
    #allocation7 [shape = 's32[1]{0}', space=sflag, size = 0x4, scoped, tag = 'scoped memory for tpu_custom_call.1']
    %12 = vsyncpa [#allocation3], 0
    %13 = vsyncpa [#allocation4], 0
    %14 = vsyncpa [#allocation7], 0
    // Predicated region
    $region2: #{tpu_custom_call.1} parent=1 // pred_check
      _
    $region3: #{tpu_custom_call.1} parent=1 // pred_check_branch
      %16 = sbr.rel (0) target = $region5
    $region4: #{tpu_custom_call.1} parent=1 // pred_region
      _
    $region5: #{tpu_custom_call.1} parent=1 // pred_fallthru
      _
    // Predicated region
    $region6: #{tpu_custom_call.1} parent=1 // pred_check
      _
    $region7: #{tpu_custom_call.1} parent=1 // pred_check_branch
      %18 = sbr.rel (0) target = $region9
    $region8: #{tpu_custom_call.1} parent=1 // pred_region
      %s20 = ssub.s32 256, 256
      %21 = vsyncadd [#allocation3], %s20
      %s22 = sshll.u32 [#allocation2], 4
      %s23 = int_to_ptr.vmem [resolvable:$true] %s22
      %28 = dma.hbm_to_vmem [thread:$0]  %s1, 256, %s23, [#allocation3], 64, 64, 4
    $region9: #{tpu_custom_call.1} parent=1 // pred_fallthru
      _
    // Predicated region
    $region10: #{tpu_custom_call.1} parent=1 // pred_check
      _
    $region11: #{tpu_custom_call.1} parent=1 // pred_check_branch
      %30 = sbr.rel (0) target = $region13
    $region12: #{tpu_custom_call.1} parent=1 // pred_region
      _
    $region13: #{tpu_custom_call.1} parent=1 // pred_fallthru
      _
    // Predicated region
    $region14: #{tpu_custom_call.1} parent=1 // pred_check
      _
    $region15: #{tpu_custom_call.1} parent=1 // pred_check_branch
      %32 = sbr.rel (0) target = $region17
    $region16: #{tpu_custom_call.1} parent=1 // pred_region
      _
    $region17: #{tpu_custom_call.1} parent=1 // pred_fallthru
      _
    // Predicated region
    $region18: #{tpu_custom_call.1} parent=1 // pred_check
      _
    $region19: #{tpu_custom_call.1} parent=1 // pred_check_branch
      %34 = sbr.rel (0) target = $region21
    $region20: #{tpu_custom_call.1} parent=1 // pred_region
      _
    $region21: #{tpu_custom_call.1} parent=1 // pred_fallthru
      _
    // Predicated region
    $region22: #{tpu_custom_call.1} parent=1 // pred_check
      _
    $region23: #{tpu_custom_call.1} parent=1 // pred_check_branch
      %36 = sbr.rel (0) target = $region25
    $region24: #{tpu_custom_call.1} parent=1 // pred_region
      %37 = dma.done [#allocation3], 256
    $region25: #{tpu_custom_call.1} parent=1 // pred_fallthru
      _
    %v39 = vld [vmem:[%s0] sm:$0xff]
    %v40 = vld [vmem:[%s0 + $0x8] sm:$0xff]
    %v41 = vld [vmem:[%s0 + $0x10] sm:$0xff]
    %v42 = vld [vmem:[%s0 + $0x18] sm:$0xff]
    %v43 = vld [vmem:[%s0 + $0x20] sm:$0xff]
    %v44 = vld [vmem:[%s0 + $0x28] sm:$0xff]
    %v45 = vld [vmem:[%s0 + $0x30] sm:$0xff]
    %v46 = vld [vmem:[%s0 + $0x38] sm:$0xff]
    %v47 = vpack.c.bf16 %v40, %v39
    %v48 = vpack.c.bf16 %v42, %v41
    %v49 = vpack.c.bf16 %v44, %v43
    %v50 = vpack.c.bf16 %v46, %v45
    %v51 = vld [vmem:[#allocation2] sm:$0xf]
    %v52 = vld [vmem:[#allocation2 + $0x4] sm:$0xf]
    %v53 = vld [vmem:[#allocation2 + $0x8] sm:$0xf]
    %v54 = vld [vmem:[#allocation2 + $0xc] sm:$0xf]
    %v55 = vld [vmem:[%s2] sm:$0xf]
    %v56 = vld [vmem:[%s2 + $0x4] sm:$0xf]
    %v57 = vld [vmem:[%s2 + $0x8] sm:$0xf]
    %v58 = vld [vmem:[%s2 + $0xc] sm:$0xf]
    %v59 = vld [vmem:[%s2 + $0x10] sm:$0xf]
    %v60 = vld [vmem:[%s2 + $0x14] sm:$0xf]
    %v61 = vld [vmem:[%s2 + $0x18] sm:$0xf]
    %v62 = vld [vmem:[%s2 + $0x1c] sm:$0xf]
    %v63 = vld [vmem:[%s2 + $0x20] sm:$0xf]
    %v64 = vld [vmem:[%s2 + $0x24] sm:$0xf]
    %v65 = vld [vmem:[%s2 + $0x28] sm:$0xf]
    %v66 = vld [vmem:[%s2 + $0x2c] sm:$0xf]
    %v67 = vld [vmem:[%s3] sm:$0xf]
    %v68 = vld [vmem:[%s3 + $0x4] sm:$0xf]
    %v69 = vld [vmem:[%s3 + $0x8] sm:$0xf]
    %v70 = vld [vmem:[%s3 + $0xc] sm:$0xf]
    %v71 = vld [vmem:[%s3 + $0x10] sm:$0xf]
    %v72 = vld [vmem:[%s3 + $0x14] sm:$0xf]
    %v73 = vld [vmem:[%s3 + $0x18] sm:$0xf]
    %v74 = vld [vmem:[%s3 + $0x1c] sm:$0xf]
    %v75 = vld [vmem:[%s3 + $0x20] sm:$0xf]
    %v76 = vld [vmem:[%s3 + $0x24] sm:$0xf]
    %v77 = vld [vmem:[%s3 + $0x28] sm:$0xf]
    %v78 = vld [vmem:[%s3 + $0x2c] sm:$0xf]
    %v79 = vld [vmem:[%s4] sm:$0x1]
    %s80 = scalar_lea.vmem %s4, 1
    %v81 = vld [vmem:[%s80] sm:$0x1]
    %s82 = scalar_lea.vmem %s4, 2
    %v83 = vld [vmem:[%s82] sm:$0x1]
    %v85 = vlaneseq
    %v86 = vshrl.u32 %v85, 7
    %v87 = vsub.s32 0, %v86
    %v88 = vrot.slane %v79, %v87
    %v94 = vunpack.c.l.b16 %v51
    %v95 = vunpack.c.l.b16 %v52
    %v96 = vunpack.c.l.b16 %v53
    %v97 = vunpack.c.l.b16 %v54
    %v98 = vpack.c.b16 %v95, %v94
    %v99 = vpack.c.b16 %v97, %v96
    %vm102 = vcmask 261120
    %v104 = vsel %vm102, %v47, 0
    %v107 = vsel %vm102, %v48, 0
    %v110 = vsel %vm102, %v49, 0
    %v113 = vsel %vm102, %v50, 0
    %115 = vmatprep.subr.bf16.mxu0 0
    %116 = vmatpush1.bf16.msra.mxu0 %v98
    %117 = vmatprep.subr.bf16.mxu0 0
    %118 = vmatpush1.bf16.msra.mxu0 %v99
    %119 = vmatprep.subr.bf16.mxu0 0
    %120 = vmatpush1.bf16.msra.mxu0 0
    %121 = vmatprep.subr.bf16.mxu0 0
    %122 = vmatpush1.bf16.msra.mxu0 0
    %123 = vmatprep.subr.bf16.mxu0 0
    %124 = vmatpush1.bf16.msra.mxu0 0
    %125 = vmatprep.subr.bf16.mxu0 0
    %126 = vmatpush1.bf16.msra.mxu0 0
    %127 = vmatprep.subr.bf16.mxu0 0
    %128 = vmatpush1.bf16.msra.mxu0 0
    %129 = vmatprep.subr.bf16.mxu0 0
    %130 = vmatpush1.bf16.msra.mxu0 0
    %131 = vmatprep.subr.bf16.mxu0 0
    %132 = vmatpush1.bf16.msra.mxu0 0
    %133 = vmatprep.subr.bf16.mxu0 0
    %134 = vmatpush1.bf16.msra.mxu0 0
    %135 = vmatprep.subr.bf16.mxu0 0
    %136 = vmatpush1.bf16.msra.mxu0 0
    %137 = vmatprep.subr.bf16.mxu0 0
    %138 = vmatpush1.bf16.msra.mxu0 0
    %139 = vmatprep.subr.bf16.mxu0 0
    %140 = vmatpush1.bf16.msra.mxu0 0
    %141 = vmatprep.subr.bf16.mxu0 0
    %142 = vmatpush1.bf16.msra.mxu0 0
    %143 = vmatprep.subr.bf16.mxu0 0
    %144 = vmatpush1.bf16.msra.mxu0 0
    %145 = vmatprep.subr.bf16.mxu0 0
    %146 = vmatpush1.bf16.msra.mxu0 0
    %147 = vmatprep.mubr.bf16.mxu0 0
    %148 = vmatmul.mubr.bf16.gmra.mrb[0].mxu0 %v104
    %v149 = vpop.f32.mrb[0].mxu0
    %v150 = vadd.f32 %v88, %v149
    %v151 = vpop.f32.mrb[0].mxu0
    %v152 = vpop.f32.mrb[0].mxu0
    %v153 = vadd.f32 %v88, %v152
    %v154 = vpop.f32.mrb[0].mxu0
    %155 = vmatprep.mubr.bf16.mxu0 0
    %156 = vmatmul.mubr.bf16.gmra.mrb[0].mxu0 %v107
    %v157 = vpop.f32.mrb[0].mxu0
    %v158 = vadd.f32 %v88, %v157
    %v159 = vpop.f32.mrb[0].mxu0
    %v160 = vpop.f32.mrb[0].mxu0
    %v161 = vadd.f32 %v88, %v160
    %v162 = vpop.f32.mrb[0].mxu0
    %163 = vmatprep.mubr.bf16.mxu0 0
    %164 = vmatmul.mubr.bf16.gmra.mrb[0].mxu0 %v110
    %v165 = vpop.f32.mrb[0].mxu0
    %v166 = vadd.f32 %v88, %v165
    %v167 = vpop.f32.mrb[0].mxu0
    %v168 = vpop.f32.mrb[0].mxu0
    %v169 = vadd.f32 %v88, %v168
    %v170 = vpop.f32.mrb[0].mxu0
    %171 = vmatprep.mubr.bf16.mxu0 0
    %172 = vmatmul.mubr.bf16.gmra.mrb[0].mxu0 %v113
    %v173 = vpop.f32.mrb[0].mxu0
    %v174 = vadd.f32 %v88, %v173
    %v175 = vpop.f32.mrb[0].mxu0
    %v176 = vpop.f32.mrb[0].mxu0
    %v177 = vadd.f32 %v88, %v176
    %v178 = vpop.f32.mrb[0].mxu0
    %179 = vdwg.mxu0
    %vm180 = vcmp.gt.f32.partialorder %v150, 0.0
    %vm181 = vcmp.gt.f32.partialorder %v153, 0.0
    %vm182 = vcmp.gt.f32.partialorder %v158, 0.0
    %vm183 = vcmp.gt.f32.partialorder %v161, 0.0
    %vm184 = vcmp.gt.f32.partialorder %v166, 0.0
    %vm185 = vcmp.gt.f32.partialorder %v169, 0.0
    %vm186 = vcmp.gt.f32.partialorder %v174, 0.0
    %vm187 = vcmp.gt.f32.partialorder %v177, 0.0
    %v188 = vmul.f32 %v150, 1.442695
    %v189 = vpow.pop %v188
    %v190 = vmul.f32 %v153, 1.442695
    %v191 = vpow.pop %v190
    %v192 = vmul.f32 %v158, 1.442695
    %v193 = vpow.pop %v192
    %v194 = vmul.f32 %v161, 1.442695
    %v195 = vpow.pop %v194
    %v196 = vmul.f32 %v166, 1.442695
    %v197 = vpow.pop %v196
    %v198 = vmul.f32 %v169, 1.442695
    %v199 = vpow.pop %v198
    %v200 = vmul.f32 %v174, 1.442695
    %v201 = vpow.pop %v200
    %v202 = vmul.f32 %v177, 1.442695
    %v203 = vpow.pop %v202
    %v204 = vsub.f32 %v189, 1.0
    %v205 = vsub.f32 %v191, 1.0
    %v206 = vsub.f32 %v193, 1.0
    %v207 = vsub.f32 %v195, 1.0
    %v208 = vsub.f32 %v197, 1.0
    %v209 = vsub.f32 %v199, 1.0
    %v210 = vsub.f32 %v201, 1.0
    %v211 = vsub.f32 %v203, 1.0
    %v212 = vmul.f32 %v204, 1.6732632
    %v213 = vmul.f32 %v205, 1.6732632
    %v214 = vmul.f32 %v206, 1.6732632
    %v215 = vmul.f32 %v207, 1.6732632
    %v216 = vmul.f32 %v208, 1.6732632
    %v217 = vmul.f32 %v209, 1.6732632
    %v218 = vmul.f32 %v210, 1.6732632
    %v219 = vmul.f32 %v211, 1.6732632
    %v220 = vsel %vm180, %v150, %v212
    %v221 = vsel %vm181, %v153, %v213
    %v222 = vsel %vm182, %v158, %v214
    %v223 = vsel %vm183, %v161, %v215
    %v224 = vsel %vm184, %v166, %v216
    %v225 = vsel %vm185, %v169, %v217
    %v226 = vsel %vm186, %v174, %v218
    %v227 = vsel %vm187, %v177, %v219
    %v228 = vmul.f32 %v220, 1.050701
    %v229 = vmul.f32 %v221, 1.050701
    %v230 = vmul.f32 %v222, 1.050701
    %v231 = vmul.f32 %v223, 1.050701
    %v232 = vmul.f32 %v224, 1.050701
    %v233 = vmul.f32 %v225, 1.050701
    %v234 = vmul.f32 %v226, 1.050701
    %v235 = vmul.f32 %v227, 1.050701
    %v236 = vpack.c.bf16 %v229, %v228
    %v237 = vpack.c.bf16 %v231, %v230
    %v238 = vpack.c.bf16 %v233, %v232
    %v239 = vpack.c.bf16 %v235, %v234
    %v241 = vlaneseq
    %v242 = vshrl.u32 %v241, 7
    %v243 = vsub.s32 0, %v242
    %v244 = vrot.slane %v81, %v243
    %v258 = vunpack.c.l.b16 %v55
    %v259 = vunpack.c.l.b16 %v56
    %v260 = vunpack.c.l.b16 %v57
    %v261 = vunpack.c.l.b16 %v58
    %v262 = vunpack.c.l.b16 %v59
    %v263 = vunpack.c.l.b16 %v60
    %v264 = vunpack.c.l.b16 %v61
    %v265 = vunpack.c.l.b16 %v62
    %v266 = vunpack.c.l.b16 %v63
    %v267 = vunpack.c.l.b16 %v64
    %v268 = vunpack.c.l.b16 %v65
    %v269 = vunpack.c.l.b16 %v66
    %v270 = vpack.c.b16 %v259, %v258
    %v271 = vpack.c.b16 %v261, %v260
    %v272 = vpack.c.b16 %v263, %v262
    %v273 = vpack.c.b16 %v265, %v264
    %v274 = vpack.c.b16 %v267, %v266
    %v275 = vpack.c.b16 %v269, %v268
    %vm282 = vcmask 785408
    %v284 = vsel %vm282, %v236, 0
    %v287 = vsel %vm282, %v237, 0
    %v290 = vsel %vm282, %v238, 0
    %v293 = vsel %vm282, %v239, 0
    %295 = vmatprep.subr.bf16.mxu0 0
    %296 = vmatpush1.bf16.msra.mxu0 %v270
    %297 = vmatprep.subr.bf16.mxu0 0
    %298 = vmatpush1.bf16.msra.mxu0 %v271
    %299 = vmatprep.subr.bf16.mxu0 0
    %300 = vmatpush1.bf16.msra.mxu0 %v272
    %301 = vmatprep.subr.bf16.mxu0 0
    %302 = vmatpush1.bf16.msra.mxu0 %v273
    %303 = vmatprep.subr.bf16.mxu0 0
    %304 = vmatpush1.bf16.msra.mxu0 %v274
    %305 = vmatprep.subr.bf16.mxu0 0
    %306 = vmatpush1.bf16.msra.mxu0 %v275
    %307 = vmatprep.subr.bf16.mxu0 0
    %308 = vmatpush1.bf16.msra.mxu0 0
    %309 = vmatprep.subr.bf16.mxu0 0
    %310 = vmatpush1.bf16.msra.mxu0 0
    %311 = vmatprep.subr.bf16.mxu0 0
    %312 = vmatpush1.bf16.msra.mxu0 0
    %313 = vmatprep.subr.bf16.mxu0 0
    %314 = vmatpush1.bf16.msra.mxu0 0
    %315 = vmatprep.subr.bf16.mxu0 0
    %316 = vmatpush1.bf16.msra.mxu0 0
    %317 = vmatprep.subr.bf16.mxu0 0
    %318 = vmatpush1.bf16.msra.mxu0 0
    %319 = vmatprep.subr.bf16.mxu0 0
    %320 = vmatpush1.bf16.msra.mxu0 0
    %321 = vmatprep.subr.bf16.mxu0 0
    %322 = vmatpush1.bf16.msra.mxu0 0
    %323 = vmatprep.subr.bf16.mxu0 0
    %324 = vmatpush1.bf16.msra.mxu0 0
    %325 = vmatprep.subr.bf16.mxu0 0
    %326 = vmatpush1.bf16.msra.mxu0 0
    %327 = vmatprep.mubr.bf16.mxu0 0
    %328 = vmatmul.mubr.bf16.gmra.mrb[0].mxu0 %v284
    %v329 = vpop.f32.mrb[0].mxu0
    %v330 = vadd.f32 %v244, %v329
    %v331 = vpop.f32.mrb[0].mxu0
    %v332 = vpop.f32.mrb[0].mxu0
    %v333 = vadd.f32 %v244, %v332
    %v334 = vpop.f32.mrb[0].mxu0
    %335 = vmatprep.mubr.bf16.mxu0 0
    %336 = vmatmul.mubr.bf16.gmra.mrb[0].mxu0 %v287
    %v337 = vpop.f32.mrb[0].mxu0
    %v338 = vadd.f32 %v244, %v337
    %v339 = vpop.f32.mrb[0].mxu0
    %v340 = vpop.f32.mrb[0].mxu0
    %v341 = vadd.f32 %v244, %v340
    %v342 = vpop.f32.mrb[0].mxu0
    %343 = vmatprep.mubr.bf16.mxu0 0
    %344 = vmatmul.mubr.bf16.gmra.mrb[0].mxu0 %v290
    %v345 = vpop.f32.mrb[0].mxu0
    %v346 = vadd.f32 %v244, %v345
    %v347 = vpop.f32.mrb[0].mxu0
    %v348 = vpop.f32.mrb[0].mxu0
    %v349 = vadd.f32 %v244, %v348
    %v350 = vpop.f32.mrb[0].mxu0
    %351 = vmatprep.mubr.bf16.mxu0 0
    %352 = vmatmul.mubr.bf16.gmra.mrb[0].mxu0 %v293
    %v353 = vpop.f32.mrb[0].mxu0
    %v354 = vadd.f32 %v244, %v353
    %v355 = vpop.f32.mrb[0].mxu0
    %v356 = vpop.f32.mrb[0].mxu0
    %v357 = vadd.f32 %v244, %v356
    %v358 = vpop.f32.mrb[0].mxu0
    %359 = vdwg.mxu0
    %vm360 = vcmp.gt.f32.partialorder %v330, 0.0
    %vm361 = vcmp.gt.f32.partialorder %v333, 0.0
    %vm362 = vcmp.gt.f32.partialorder %v338, 0.0
    %vm363 = vcmp.gt.f32.partialorder %v341, 0.0
    %vm364 = vcmp.gt.f32.partialorder %v346, 0.0
    %vm365 = vcmp.gt.f32.partialorder %v349, 0.0
    %vm366 = vcmp.gt.f32.partialorder %v354, 0.0
    %vm367 = vcmp.gt.f32.partialorder %v357, 0.0
    %v368 = vmul.f32 %v330, 1.442695
    %v369 = vpow.pop %v368
    %v370 = vmul.f32 %v333, 1.442695
    %v371 = vpow.pop %v370
    %v372 = vmul.f32 %v338, 1.442695
    %v373 = vpow.pop %v372
    %v374 = vmul.f32 %v341, 1.442695
    %v375 = vpow.pop %v374
    %v376 = vmul.f32 %v346, 1.442695
    %v377 = vpow.pop %v376
    %v378 = vmul.f32 %v349, 1.442695
    %v379 = vpow.pop %v378
    %v380 = vmul.f32 %v354, 1.442695
    %v381 = vpow.pop %v380
    %v382 = vmul.f32 %v357, 1.442695
    %v383 = vpow.pop %v382
    %v384 = vsub.f32 %v369, 1.0
    %v385 = vsub.f32 %v371, 1.0
    %v386 = vsub.f32 %v373, 1.0
    %v387 = vsub.f32 %v375, 1.0
    %v388 = vsub.f32 %v377, 1.0
    %v389 = vsub.f32 %v379, 1.0
    %v390 = vsub.f32 %v381, 1.0
    %v391 = vsub.f32 %v383, 1.0
    %v392 = vmul.f32 %v384, 1.6732632
    %v393 = vmul.f32 %v385, 1.6732632
    %v394 = vmul.f32 %v386, 1.6732632
    %v395 = vmul.f32 %v387, 1.6732632
    %v396 = vmul.f32 %v388, 1.6732632
    %v397 = vmul.f32 %v389, 1.6732632
    %v398 = vmul.f32 %v390, 1.6732632
    %v399 = vmul.f32 %v391, 1.6732632
    %v400 = vsel %vm360, %v330, %v392
    %v401 = vsel %vm361, %v333, %v393
    %v402 = vsel %vm362, %v338, %v394
    %v403 = vsel %vm363, %v341, %v395
    %v404 = vsel %vm364, %v346, %v396
    %v405 = vsel %vm365, %v349, %v397
    %v406 = vsel %vm366, %v354, %v398
    %v407 = vsel %vm367, %v357, %v399
    %v408 = vmul.f32 %v400, 1.050701
    %v409 = vmul.f32 %v401, 1.050701
    %v410 = vmul.f32 %v402, 1.050701
    %v411 = vmul.f32 %v403, 1.050701
    %v412 = vmul.f32 %v404, 1.050701
    %v413 = vmul.f32 %v405, 1.050701
    %v414 = vmul.f32 %v406, 1.050701
    %v415 = vmul.f32 %v407, 1.050701
    %v416 = vpack.c.bf16 %v409, %v408
    %v417 = vpack.c.bf16 %v411, %v410
    %v418 = vpack.c.bf16 %v413, %v412
    %v419 = vpack.c.bf16 %v415, %v414
    %v421 = vlaneseq
    %v422 = vshrl.u32 %v421, 7
    %v423 = vsub.s32 0, %v422
    %v424 = vrot.slane %v83, %v423
    %v438 = vunpack.c.l.b16 %v67
    %v439 = vunpack.c.l.b16 %v68
    %v440 = vunpack.c.l.b16 %v69
    %v441 = vunpack.c.l.b16 %v70
    %v442 = vunpack.c.l.b16 %v71
    %v443 = vunpack.c.l.b16 %v72
    %v444 = vunpack.c.l.b16 %v73
    %v445 = vunpack.c.l.b16 %v74
    %v446 = vunpack.c.l.b16 %v75
    %v447 = vunpack.c.l.b16 %v76
    %v448 = vunpack.c.l.b16 %v77
    %v449 = vunpack.c.l.b16 %v78
    %v450 = vpack.c.b16 %v439, %v438
    %v451 = vpack.c.b16 %v441, %v440
    %v452 = vpack.c.b16 %v443, %v442
    %v453 = vpack.c.b16 %v445, %v444
    %v454 = vpack.c.b16 %v447, %v446
    %v455 = vpack.c.b16 %v449, %v448
    %v463 = vsel %vm282, %v416, 0
    %v466 = vsel %vm282, %v417, 0
    %v469 = vsel %vm282, %v418, 0
    %v472 = vsel %vm282, %v419, 0
    %474 = vmatprep.subr.bf16.mxu0 0
    %475 = vmatpush1.bf16.msra.mxu0 %v450
    %476 = vmatprep.subr.bf16.mxu0 0
    %477 = vmatpush1.bf16.msra.mxu0 %v451
    %478 = vmatprep.subr.bf16.mxu0 0
    %479 = vmatpush1.bf16.msra.mxu0 %v452
    %480 = vmatprep.subr.bf16.mxu0 0
    %481 = vmatpush1.bf16.msra.mxu0 %v453
    %482 = vmatprep.subr.bf16.mxu0 0
    %483 = vmatpush1.bf16.msra.mxu0 %v454
    %484 = vmatprep.subr.bf16.mxu0 0
    %485 = vmatpush1.bf16.msra.mxu0 %v455
    %486 = vmatprep.subr.bf16.mxu0 0
    %487 = vmatpush1.bf16.msra.mxu0 0
    %488 = vmatprep.subr.bf16.mxu0 0
    %489 = vmatpush1.bf16.msra.mxu0 0
    %490 = vmatprep.subr.bf16.mxu0 0
    %491 = vmatpush1.bf16.msra.mxu0 0
    %492 = vmatprep.subr.bf16.mxu0 0
    %493 = vmatpush1.bf16.msra.mxu0 0
    %494 = vmatprep.subr.bf16.mxu0 0
    %495 = vmatpush1.bf16.msra.mxu0 0
    %496 = vmatprep.subr.bf16.mxu0 0
    %497 = vmatpush1.bf16.msra.mxu0 0
    %498 = vmatprep.subr.bf16.mxu0 0
    %499 = vmatpush1.bf16.msra.mxu0 0
    %500 = vmatprep.subr.bf16.mxu0 0
    %501 = vmatpush1.bf16.msra.mxu0 0
    %502 = vmatprep.subr.bf16.mxu0 0
    %503 = vmatpush1.bf16.msra.mxu0 0
    %504 = vmatprep.subr.bf16.mxu0 0
    %505 = vmatpush1.bf16.msra.mxu0 0
    %506 = vmatprep.mubr.bf16.mxu0 0
    %507 = vmatmul.mubr.bf16.gmra.mrb[0].mxu0 %v463
    %v508 = vpop.f32.mrb[0].mxu0
    %v509 = vadd.f32 %v424, %v508
    %v510 = vpop.f32.mrb[0].mxu0
    %v511 = vpop.f32.mrb[0].mxu0
    %v512 = vadd.f32 %v424, %v511
    %v513 = vpop.f32.mrb[0].mxu0
    %514 = vmatprep.mubr.bf16.mxu0 0
    %515 = vmatmul.mubr.bf16.gmra.mrb[0].mxu0 %v466
    %v516 = vpop.f32.mrb[0].mxu0
    %v517 = vadd.f32 %v424, %v516
    %v518 = vpop.f32.mrb[0].mxu0
    %v519 = vpop.f32.mrb[0].mxu0
    %v520 = vadd.f32 %v424, %v519
    %v521 = vpop.f32.mrb[0].mxu0
    %522 = vmatprep.mubr.bf16.mxu0 0
    %523 = vmatmul.mubr.bf16.gmra.mrb[0].mxu0 %v469
    %v524 = vpop.f32.mrb[0].mxu0
    %v525 = vadd.f32 %v424, %v524
    %v526 = vpop.f32.mrb[0].mxu0
    %v527 = vpop.f32.mrb[0].mxu0
    %v528 = vadd.f32 %v424, %v527
    %v529 = vpop.f32.mrb[0].mxu0
    %530 = vmatprep.mubr.bf16.mxu0 0
    %531 = vmatmul.mubr.bf16.gmra.mrb[0].mxu0 %v472
    %v532 = vpop.f32.mrb[0].mxu0
    %v533 = vadd.f32 %v424, %v532
    %v534 = vpop.f32.mrb[0].mxu0
    %v535 = vpop.f32.mrb[0].mxu0
    %v536 = vadd.f32 %v424, %v535
    %v537 = vpop.f32.mrb[0].mxu0
    %538 = vdwg.mxu0
    %v539 = vpack.c.bf16 %v512, %v509
    %v540 = vpack.c.bf16 %v520, %v517
    %v541 = vpack.c.bf16 %v528, %v525
    %v542 = vpack.c.bf16 %v536, %v533
    %v547 = vunpack.c.l.b16 %v539
    %v548 = vunpack.c.h.b16 %v539
    %v549 = vunpack.c.l.b16 %v540
    %v550 = vunpack.c.h.b16 %v540
    %v551 = vunpack.c.l.b16 %v541
    %v552 = vunpack.c.h.b16 %v541
    %v553 = vunpack.c.l.b16 %v542
    %v554 = vunpack.c.h.b16 %v542
    %v555 = vpack.c.b16 %v547, %v547
    %v556 = vpack.c.b16 %v548, %v548
    %v557 = vpack.c.b16 %v549, %v549
    %v558 = vpack.c.b16 %v550, %v550
    %v559 = vpack.c.b16 %v551, %v551
    %v560 = vpack.c.b16 %v552, %v552
    %v561 = vpack.c.b16 %v553, %v553
    %v562 = vpack.c.b16 %v554, %v554
    %563 = vrot.lane.b32.xlu0 %v555, 96
    %v564 = vpop.permute.xlu0 %563
    %v566 = vsel %vm102, %v555, 0
    %v569 = vsel %vm102, %v564, 0
    %571 = vmatprep.subr.bf16.mxu0 0
    %572 = vmatpush1.bf16.xpose.msra.mxu0 %v569
    %573 = vmatprep.subr.bf16.mxu0 0
    %574 = vmatpush1.bf16.xpose.msra.mxu0 0
    %575 = vmatprep.subr.bf16.mxu0 0
    %576 = vmatpush1.bf16.xpose.msra.mxu0 0
    %577 = vmatprep.subr.bf16.mxu0 0
    %578 = vmatpush1.bf16.xpose.msra.mxu0 0
    %579 = vmatprep.subr.bf16.mxu0 0
    %580 = vmatpush1.bf16.xpose.msra.mxu0 0
    %581 = vmatprep.subr.bf16.mxu0 0
    %582 = vmatpush1.bf16.xpose.msra.mxu0 0
    %583 = vmatprep.subr.bf16.mxu0 0
    %584 = vmatpush1.bf16.xpose.msra.mxu0 0
    %585 = vmatprep.subr.bf16.mxu0 0
    %586 = vmatpush1.bf16.xpose.msra.mxu0 0
    %587 = vmatprep.subr.bf16.mxu0 0
    %588 = vmatpush1.bf16.xpose.msra.mxu0 0
    %589 = vmatprep.subr.bf16.mxu0 0
    %590 = vmatpush1.bf16.xpose.msra.mxu0 0
    %591 = vmatprep.subr.bf16.mxu0 0
    %592 = vmatpush1.bf16.xpose.msra.mxu0 0
    %593 = vmatprep.subr.bf16.mxu0 0
    %594 = vmatpush1.bf16.xpose.msra.mxu0 0
    %595 = vmatprep.subr.bf16.mxu0 0
    %596 = vmatpush1.bf16.xpose.msra.mxu0 0
    %597 = vmatprep.subr.bf16.mxu0 0
    %598 = vmatpush1.bf16.xpose.msra.mxu0 0
    %599 = vmatprep.subr.bf16.mxu0 0
    %600 = vmatpush1.bf16.xpose.msra.mxu0 0
    %601 = vmatprep.subr.bf16.mxu0 0
    %602 = vmatpush1.bf16.xpose.msra.mxu0 0
    %603 = vmatprep.mubr.bf16.mxu0 0
    %604 = vmatmul.mubr.bf16.gmra.mrb[0].mxu0 %v566
    %v605 = vpop.f32.mrb[0].mxu0
    %v606 = vadd.f32 0.0, %v605
    %v607 = vpop.f32.mrb[0].mxu0
    %v608 = vpop.f32.mrb[0].mxu0
    %v609 = vpop.f32.mrb[0].mxu0
    %610 = vdwg.mxu0
    %611 = vrot.lane.b32.xlu0 %v556, 96
    %v612 = vpop.permute.xlu0 %611
    %v614 = vsel %vm102, %v556, 0
    %v617 = vsel %vm102, %v612, 0
    %619 = vmatprep.subr.bf16.mxu0 0
    %620 = vmatpush1.bf16.xpose.msra.mxu0 %v617
    %621 = vmatprep.subr.bf16.mxu0 0
    %622 = vmatpush1.bf16.xpose.msra.mxu0 0
    %623 = vmatprep.subr.bf16.mxu0 0
    %624 = vmatpush1.bf16.xpose.msra.mxu0 0
    %625 = vmatprep.subr.bf16.mxu0 0
    %626 = vmatpush1.bf16.xpose.msra.mxu0 0
    %627 = vmatprep.subr.bf16.mxu0 0
    %628 = vmatpush1.bf16.xpose.msra.mxu0 0
    %629 = vmatprep.subr.bf16.mxu0 0
    %630 = vmatpush1.bf16.xpose.msra.mxu0 0
    %631 = vmatprep.subr.bf16.mxu0 0
    %632 = vmatpush1.bf16.xpose.msra.mxu0 0
    %633 = vmatprep.subr.bf16.mxu0 0
    %634 = vmatpush1.bf16.xpose.msra.mxu0 0
    %635 = vmatprep.subr.bf16.mxu0 0
    %636 = vmatpush1.bf16.xpose.msra.mxu0 0
    %637 = vmatprep.subr.bf16.mxu0 0
    %638 = vmatpush1.bf16.xpose.msra.mxu0 0
    %639 = vmatprep.subr.bf16.mxu0 0
    %640 = vmatpush1.bf16.xpose.msra.mxu0 0
    %641 = vmatprep.subr.bf16.mxu0 0
    %642 = vmatpush1.bf16.xpose.msra.mxu0 0
    %643 = vmatprep.subr.bf16.mxu0 0
    %644 = vmatpush1.bf16.xpose.msra.mxu0 0
    %645 = vmatprep.subr.bf16.mxu0 0
    %646 = vmatpush1.bf16.xpose.msra.mxu0 0
    %647 = vmatprep.subr.bf16.mxu0 0
    %648 = vmatpush1.bf16.xpose.msra.mxu0 0
    %649 = vmatprep.subr.bf16.mxu0 0
    %650 = vmatpush1.bf16.xpose.msra.mxu0 0
    %651 = vmatprep.mubr.bf16.mxu0 0
    %652 = vmatmul.mubr.bf16.gmra.mrb[0].mxu0 %v614
    %v653 = vpop.f32.mrb[0].mxu0
    %v654 = vadd.f32 0.0, %v653
    %v655 = vpop.f32.mrb[0].mxu0
    %v656 = vpop.f32.mrb[0].mxu0
    %v657 = vpop.f32.mrb[0].mxu0
    %658 = vdwg.mxu0
    %659 = vrot.lane.b32.xlu0 %v557, 96
    %v660 = vpop.permute.xlu0 %659
    %v662 = vsel %vm102, %v557, 0
    %v665 = vsel %vm102, %v660, 0
    %667 = vmatprep.subr.bf16.mxu0 0
    %668 = vmatpush1.bf16.xpose.msra.mxu0 %v665
    %669 = vmatprep.subr.bf16.mxu0 0
    %670 = vmatpush1.bf16.xpose.msra.mxu0 0
    %671 = vmatprep.subr.bf16.mxu0 0
    %672 = vmatpush1.bf16.xpose.msra.mxu0 0
    %673 = vmatprep.subr.bf16.mxu0 0
    %674 = vmatpush1.bf16.xpose.msra.mxu0 0
    %675 = vmatprep.subr.bf16.mxu0 0
    %676 = vmatpush1.bf16.xpose.msra.mxu0 0
    %677 = vmatprep.subr.bf16.mxu0 0
    %678 = vmatpush1.bf16.xpose.msra.mxu0 0
    %679 = vmatprep.subr.bf16.mxu0 0
    %680 = vmatpush1.bf16.xpose.msra.mxu0 0
    %681 = vmatprep.subr.bf16.mxu0 0
    %682 = vmatpush1.bf16.xpose.msra.mxu0 0
    %683 = vmatprep.subr.bf16.mxu0 0
    %684 = vmatpush1.bf16.xpose.msra.mxu0 0
    %685 = vmatprep.subr.bf16.mxu0 0
    %686 = vmatpush1.bf16.xpose.msra.mxu0 0
    %687 = vmatprep.subr.bf16.mxu0 0
    %688 = vmatpush1.bf16.xpose.msra.mxu0 0
    %689 = vmatprep.subr.bf16.mxu0 0
    %690 = vmatpush1.bf16.xpose.msra.mxu0 0
    %691 = vmatprep.subr.bf16.mxu0 0
    %692 = vmatpush1.bf16.xpose.msra.mxu0 0
    %693 = vmatprep.subr.bf16.mxu0 0
    %694 = vmatpush1.bf16.xpose.msra.mxu0 0
    %695 = vmatprep.subr.bf16.mxu0 0
    %696 = vmatpush1.bf16.xpose.msra.mxu0 0
    %697 = vmatprep.subr.bf16.mxu0 0
    %698 = vmatpush1.bf16.xpose.msra.mxu0 0
    %699 = vmatprep.mubr.bf16.mxu0 0
    %700 = vmatmul.mubr.bf16.gmra.mrb[0].mxu0 %v662
    %v701 = vpop.f32.mrb[0].mxu0
    %v702 = vadd.f32 0.0, %v701
    %v703 = vpop.f32.mrb[0].mxu0
    %v704 = vpop.f32.mrb[0].mxu0
    %v705 = vpop.f32.mrb[0].mxu0
    %706 = vdwg.mxu0
    %707 = vrot.lane.b32.xlu0 %v558, 96
    %v708 = vpop.permute.xlu0 %707
    %v710 = vsel %vm102, %v558, 0
    %v713 = vsel %vm102, %v708, 0
    %715 = vmatprep.subr.bf16.mxu0 0
    %716 = vmatpush1.bf16.xpose.msra.mxu0 %v713
    %717 = vmatprep.subr.bf16.mxu0 0
    %718 = vmatpush1.bf16.xpose.msra.mxu0 0
    %719 = vmatprep.subr.bf16.mxu0 0
    %720 = vmatpush1.bf16.xpose.msra.mxu0 0
    %721 = vmatprep.subr.bf16.mxu0 0
    %722 = vmatpush1.bf16.xpose.msra.mxu0 0
    %723 = vmatprep.subr.bf16.mxu0 0
    %724 = vmatpush1.bf16.xpose.msra.mxu0 0
    %725 = vmatprep.subr.bf16.mxu0 0
    %726 = vmatpush1.bf16.xpose.msra.mxu0 0
    %727 = vmatprep.subr.bf16.mxu0 0
    %728 = vmatpush1.bf16.xpose.msra.mxu0 0
    %729 = vmatprep.subr.bf16.mxu0 0
    %730 = vmatpush1.bf16.xpose.msra.mxu0 0
    %731 = vmatprep.subr.bf16.mxu0 0
    %732 = vmatpush1.bf16.xpose.msra.mxu0 0
    %733 = vmatprep.subr.bf16.mxu0 0
    %734 = vmatpush1.bf16.xpose.msra.mxu0 0
    %735 = vmatprep.subr.bf16.mxu0 0
    %736 = vmatpush1.bf16.xpose.msra.mxu0 0
    %737 = vmatprep.subr.bf16.mxu0 0
    %738 = vmatpush1.bf16.xpose.msra.mxu0 0
    %739 = vmatprep.subr.bf16.mxu0 0
    %740 = vmatpush1.bf16.xpose.msra.mxu0 0
    %741 = vmatprep.subr.bf16.mxu0 0
    %742 = vmatpush1.bf16.xpose.msra.mxu0 0
    %743 = vmatprep.subr.bf16.mxu0 0
    %744 = vmatpush1.bf16.xpose.msra.mxu0 0
    %745 = vmatprep.subr.bf16.mxu0 0
    %746 = vmatpush1.bf16.xpose.msra.mxu0 0
    %747 = vmatprep.mubr.bf16.mxu0 0
    %748 = vmatmul.mubr.bf16.gmra.mrb[0].mxu0 %v710
    %v749 = vpop.f32.mrb[0].mxu0
    %v750 = vadd.f32 0.0, %v749
    %v751 = vpop.f32.mrb[0].mxu0
    %v752 = vpop.f32.mrb[0].mxu0
    %v753 = vpop.f32.mrb[0].mxu0
    %754 = vdwg.mxu0
    %755 = vrot.lane.b32.xlu0 %v559, 96
    %v756 = vpop.permute.xlu0 %755
    %v758 = vsel %vm102, %v559, 0
    %v761 = vsel %vm102, %v756, 0
    %763 = vmatprep.subr.bf16.mxu0 0
    %764 = vmatpush1.bf16.xpose.msra.mxu0 %v761
    %765 = vmatprep.subr.bf16.mxu0 0
    %766 = vmatpush1.bf16.xpose.msra.mxu0 0
    %767 = vmatprep.subr.bf16.mxu0 0
    %768 = vmatpush1.bf16.xpose.msra.mxu0 0
    %769 = vmatprep.subr.bf16.mxu0 0
    %770 = vmatpush1.bf16.xpose.msra.mxu0 0
    %771 = vmatprep.subr.bf16.mxu0 0
    %772 = vmatpush1.bf16.xpose.msra.mxu0 0
    %773 = vmatprep.subr.bf16.mxu0 0
    %774 = vmatpush1.bf16.xpose.msra.mxu0 0
    %775 = vmatprep.subr.bf16.mxu0 0
    %776 = vmatpush1.bf16.xpose.msra.mxu0 0
    %777 = vmatprep.subr.bf16.mxu0 0
    %778 = vmatpush1.bf16.xpose.msra.mxu0 0
    %779 = vmatprep.subr.bf16.mxu0 0
    %780 = vmatpush1.bf16.xpose.msra.mxu0 0
    %781 = vmatprep.subr.bf16.mxu0 0
    %782 = vmatpush1.bf16.xpose.msra.mxu0 0
    %783 = vmatprep.subr.bf16.mxu0 0
    %784 = vmatpush1.bf16.xpose.msra.mxu0 0
    %785 = vmatprep.subr.bf16.mxu0 0
    %786 = vmatpush1.bf16.xpose.msra.mxu0 0
    %787 = vmatprep.subr.bf16.mxu0 0
    %788 = vmatpush1.bf16.xpose.msra.mxu0 0
    %789 = vmatprep.subr.bf16.mxu0 0
    %790 = vmatpush1.bf16.xpose.msra.mxu0 0
    %791 = vmatprep.subr.bf16.mxu0 0
    %792 = vmatpush1.bf16.xpose.msra.mxu0 0
    %793 = vmatprep.subr.bf16.mxu0 0
    %794 = vmatpush1.bf16.xpose.msra.mxu0 0
    %795 = vmatprep.mubr.bf16.mxu0 0
    %796 = vmatmul.mubr.bf16.gmra.mrb[0].mxu0 %v758
    %v797 = vpop.f32.mrb[0].mxu0
    %v798 = vadd.f32 0.0, %v797
    %v799 = vpop.f32.mrb[0].mxu0
    %v800 = vpop.f32.mrb[0].mxu0
    %v801 = vpop.f32.mrb[0].mxu0
    %802 = vdwg.mxu0
    %803 = vrot.lane.b32.xlu0 %v560, 96
    %v804 = vpop.permute.xlu0 %803
    %v806 = vsel %vm102, %v560, 0
    %v809 = vsel %vm102, %v804, 0
    %811 = vmatprep.subr.bf16.mxu0 0
    %812 = vmatpush1.bf16.xpose.msra.mxu0 %v809
    %813 = vmatprep.subr.bf16.mxu0 0
    %814 = vmatpush1.bf16.xpose.msra.mxu0 0
    %815 = vmatprep.subr.bf16.mxu0 0
    %816 = vmatpush1.bf16.xpose.msra.mxu0 0
    %817 = vmatprep.subr.bf16.mxu0 0
    %818 = vmatpush1.bf16.xpose.msra.mxu0 0
    %819 = vmatprep.subr.bf16.mxu0 0
    %820 = vmatpush1.bf16.xpose.msra.mxu0 0
    %821 = vmatprep.subr.bf16.mxu0 0
    %822 = vmatpush1.bf16.xpose.msra.mxu0 0
    %823 = vmatprep.subr.bf16.mxu0 0
    %824 = vmatpush1.bf16.xpose.msra.mxu0 0
    %825 = vmatprep.subr.bf16.mxu0 0
    %826 = vmatpush1.bf16.xpose.msra.mxu0 0
    %827 = vmatprep.subr.bf16.mxu0 0
    %828 = vmatpush1.bf16.xpose.msra.mxu0 0
    %829 = vmatprep.subr.bf16.mxu0 0
    %830 = vmatpush1.bf16.xpose.msra.mxu0 0
    %831 = vmatprep.subr.bf16.mxu0 0
    %832 = vmatpush1.bf16.xpose.msra.mxu0 0
    %833 = vmatprep.subr.bf16.mxu0 0
    %834 = vmatpush1.bf16.xpose.msra.mxu0 0
    %835 = vmatprep.subr.bf16.mxu0 0
    %836 = vmatpush1.bf16.xpose.msra.mxu0 0
    %837 = vmatprep.subr.bf16.mxu0 0
    %838 = vmatpush1.bf16.xpose.msra.mxu0 0
    %839 = vmatprep.subr.bf16.mxu0 0
    %840 = vmatpush1.bf16.xpose.msra.mxu0 0
    %841 = vmatprep.subr.bf16.mxu0 0
    %842 = vmatpush1.bf16.xpose.msra.mxu0 0
    %843 = vmatprep.mubr.bf16.mxu0 0
    %844 = vmatmul.mubr.bf16.gmra.mrb[0].mxu0 %v806
    %v845 = vpop.f32.mrb[0].mxu0
    %v846 = vadd.f32 0.0, %v845
    %v847 = vpop.f32.mrb[0].mxu0
    %v848 = vpop.f32.mrb[0].mxu0
    %v849 = vpop.f32.mrb[0].mxu0
    %850 = vdwg.mxu0
    %851 = vrot.lane.b32.xlu0 %v561, 96
    %v852 = vpop.permute.xlu0 %851
    %v854 = vsel %vm102, %v561, 0
    %v857 = vsel %vm102, %v852, 0
    %859 = vmatprep.subr.bf16.mxu0 0
    %860 = vmatpush1.bf16.xpose.msra.mxu0 %v857
    %861 = vmatprep.subr.bf16.mxu0 0
    %862 = vmatpush1.bf16.xpose.msra.mxu0 0
    %863 = vmatprep.subr.bf16.mxu0 0
    %864 = vmatpush1.bf16.xpose.msra.mxu0 0
    %865 = vmatprep.subr.bf16.mxu0 0
    %866 = vmatpush1.bf16.xpose.msra.mxu0 0
    %867 = vmatprep.subr.bf16.mxu0 0
    %868 = vmatpush1.bf16.xpose.msra.mxu0 0
    %869 = vmatprep.subr.bf16.mxu0 0
    %870 = vmatpush1.bf16.xpose.msra.mxu0 0
    %871 = vmatprep.subr.bf16.mxu0 0
    %872 = vmatpush1.bf16.xpose.msra.mxu0 0
    %873 = vmatprep.subr.bf16.mxu0 0
    %874 = vmatpush1.bf16.xpose.msra.mxu0 0
    %875 = vmatprep.subr.bf16.mxu0 0
    %876 = vmatpush1.bf16.xpose.msra.mxu0 0
    %877 = vmatprep.subr.bf16.mxu0 0
    %878 = vmatpush1.bf16.xpose.msra.mxu0 0
    %879 = vmatprep.subr.bf16.mxu0 0
    %880 = vmatpush1.bf16.xpose.msra.mxu0 0
    %881 = vmatprep.subr.bf16.mxu0 0
    %882 = vmatpush1.bf16.xpose.msra.mxu0 0
    %883 = vmatprep.subr.bf16.mxu0 0
    %884 = vmatpush1.bf16.xpose.msra.mxu0 0
    %885 = vmatprep.subr.bf16.mxu0 0
    %886 = vmatpush1.bf16.xpose.msra.mxu0 0
    %887 = vmatprep.subr.bf16.mxu0 0
    %888 = vmatpush1.bf16.xpose.msra.mxu0 0
    %889 = vmatprep.subr.bf16.mxu0 0
    %890 = vmatpush1.bf16.xpose.msra.mxu0 0
    %891 = vmatprep.mubr.bf16.mxu0 0
    %892 = vmatmul.mubr.bf16.gmra.mrb[0].mxu0 %v854
    %v893 = vpop.f32.mrb[0].mxu0
    %v894 = vadd.f32 0.0, %v893
    %v895 = vpop.f32.mrb[0].mxu0
    %v896 = vpop.f32.mrb[0].mxu0
    %v897 = vpop.f32.mrb[0].mxu0
    %898 = vdwg.mxu0
    %899 = vrot.lane.b32.xlu0 %v562, 96
    %v900 = vpop.permute.xlu0 %899
    %v902 = vsel %vm102, %v562, 0
    %v905 = vsel %vm102, %v900, 0
    %907 = vmatprep.subr.bf16.mxu0 0
    %908 = vmatpush1.bf16.xpose.msra.mxu0 %v905
    %909 = vmatprep.subr.bf16.mxu0 0
    %910 = vmatpush1.bf16.xpose.msra.mxu0 0
    %911 = vmatprep.subr.bf16.mxu0 0
    %912 = vmatpush1.bf16.xpose.msra.mxu0 0
    %913 = vmatprep.subr.bf16.mxu0 0
    %914 = vmatpush1.bf16.xpose.msra.mxu0 0
    %915 = vmatprep.subr.bf16.mxu0 0
    %916 = vmatpush1.bf16.xpose.msra.mxu0 0
    %917 = vmatprep.subr.bf16.mxu0 0
    %918 = vmatpush1.bf16.xpose.msra.mxu0 0
    %919 = vmatprep.subr.bf16.mxu0 0
    %920 = vmatpush1.bf16.xpose.msra.mxu0 0
    %921 = vmatprep.subr.bf16.mxu0 0
    %922 = vmatpush1.bf16.xpose.msra.mxu0 0
    %923 = vmatprep.subr.bf16.mxu0 0
    %924 = vmatpush1.bf16.xpose.msra.mxu0 0
    %925 = vmatprep.subr.bf16.mxu0 0
    %926 = vmatpush1.bf16.xpose.msra.mxu0 0
    %927 = vmatprep.subr.bf16.mxu0 0
    %928 = vmatpush1.bf16.xpose.msra.mxu0 0
    %929 = vmatprep.subr.bf16.mxu0 0
    %930 = vmatpush1.bf16.xpose.msra.mxu0 0
    %931 = vmatprep.subr.bf16.mxu0 0
    %932 = vmatpush1.bf16.xpose.msra.mxu0 0
    %933 = vmatprep.subr.bf16.mxu0 0
    %934 = vmatpush1.bf16.xpose.msra.mxu0 0
    %935 = vmatprep.subr.bf16.mxu0 0
    %936 = vmatpush1.bf16.xpose.msra.mxu0 0
    %937 = vmatprep.subr.bf16.mxu0 0
    %938 = vmatpush1.bf16.xpose.msra.mxu0 0
    %939 = vmatprep.mubr.bf16.mxu0 0
    %940 = vmatmul.mubr.bf16.gmra.mrb[0].mxu0 %v902
    %v941 = vpop.f32.mrb[0].mxu0
    %v942 = vadd.f32 0.0, %v941
    %v943 = vpop.f32.mrb[0].mxu0
    %v944 = vpop.f32.mrb[0].mxu0
    %v945 = vpop.f32.mrb[0].mxu0
    %946 = vdwg.mxu0
    %v947 = vmul.f32 %v606, 0.17677669
    %v948 = vmul.f32 %v654, 0.17677669
    %v949 = vmul.f32 %v702, 0.17677669
    %v950 = vmul.f32 %v750, 0.17677669
    %v951 = vmul.f32 %v798, 0.17677669
    %v952 = vmul.f32 %v846, 0.17677669
    %v953 = vmul.f32 %v894, 0.17677669
    %v954 = vmul.f32 %v942, 0.17677669
    %vm955 = vcmask 64512
    %v956 = vsel %vm955, %v947, -inf
    %957 = vmax.xlane.f32.xlu0 %v956
    %v958 = vpop.xlane.xlu0 %957
    %v959 = vsel %vm955, %v948, -inf
    %960 = vmax.xlane.f32.xlu0 %v959
    %v961 = vpop.xlane.xlu0 %960
    %v962 = vsel %vm955, %v949, -inf
    %963 = vmax.xlane.f32.xlu0 %v962
    %v964 = vpop.xlane.xlu0 %963
    %v965 = vsel %vm955, %v950, -inf
    %966 = vmax.xlane.f32.xlu0 %v965
    %v967 = vpop.xlane.xlu0 %966
    %v968 = vsel %vm955, %v951, -inf
    %969 = vmax.xlane.f32.xlu0 %v968
    %v970 = vpop.xlane.xlu0 %969
    %v971 = vsel %vm955, %v952, -inf
    %972 = vmax.xlane.f32.xlu0 %v971
    %v973 = vpop.xlane.xlu0 %972
    %v974 = vsel %vm955, %v953, -inf
    %975 = vmax.xlane.f32.xlu0 %v974
    %v976 = vpop.xlane.xlu0 %975
    %v977 = vsel %vm955, %v954, -inf
    %978 = vmax.xlane.f32.xlu0 %v977
    %v979 = vpop.xlane.xlu0 %978
    %v980 = vsub.f32 %v947, %v958
    %v981 = vsub.f32 %v948, %v961
    %v982 = vsub.f32 %v949, %v964
    %v983 = vsub.f32 %v950, %v967
    %v984 = vsub.f32 %v951, %v970
    %v985 = vsub.f32 %v952, %v973
    %v986 = vsub.f32 %v953, %v976
    %v987 = vsub.f32 %v954, %v979
    %v988 = vmul.f32 %v980, 1.442695
    %v989 = vpow.pop %v988
    %v990 = vmul.f32 %v981, 1.442695
    %v991 = vpow.pop %v990
    %v992 = vmul.f32 %v982, 1.442695
    %v993 = vpow.pop %v992
    %v994 = vmul.f32 %v983, 1.442695
    %v995 = vpow.pop %v994
    %v996 = vmul.f32 %v984, 1.442695
    %v997 = vpow.pop %v996
    %v998 = vmul.f32 %v985, 1.442695
    %v999 = vpow.pop %v998
    %v1000 = vmul.f32 %v986, 1.442695
    %v1001 = vpow.pop %v1000
    %v1002 = vmul.f32 %v987, 1.442695
    %v1003 = vpow.pop %v1002
    %v1004 = vsel %vm955, %v989, 0.0
    %1005 = vadd.xlane.f32.xlu0 %v1004
    %v1006 = vpop.xlane.xlu0 %1005
    %v1007 = vsel %vm955, %v991, 0.0
    %1008 = vadd.xlane.f32.xlu0 %v1007
    %v1009 = vpop.xlane.xlu0 %1008
    %v1010 = vsel %vm955, %v993, 0.0
    %1011 = vadd.xlane.f32.xlu0 %v1010
    %v1012 = vpop.xlane.xlu0 %1011
    %v1013 = vsel %vm955, %v995, 0.0
    %1014 = vadd.xlane.f32.xlu0 %v1013
    %v1015 = vpop.xlane.xlu0 %1014
    %v1016 = vsel %vm955, %v997, 0.0
    %1017 = vadd.xlane.f32.xlu0 %v1016
    %v1018 = vpop.xlane.xlu0 %1017
    %v1019 = vsel %vm955, %v999, 0.0
    %1020 = vadd.xlane.f32.xlu0 %v1019
    %v1021 = vpop.xlane.xlu0 %1020
    %v1022 = vsel %vm955, %v1001, 0.0
    %1023 = vadd.xlane.f32.xlu0 %v1022
    %v1024 = vpop.xlane.xlu0 %1023
    %v1025 = vsel %vm955, %v1003, 0.0
    %1026 = vadd.xlane.f32.xlu0 %v1025
    %v1027 = vpop.xlane.xlu0 %1026
    %v1028 = vrcp.pop %v1006
    %v1029 = vrcp.pop %v1009
    %v1030 = vrcp.pop %v1012
    %v1031 = vrcp.pop %v1015
    %v1032 = vrcp.pop %v1018
    %v1033 = vrcp.pop %v1021
    %v1034 = vrcp.pop %v1024
    %v1035 = vrcp.pop %v1027
    %v1036 = vmul.f32 %v989, %v1028
    %v1037 = vmul.f32 %v991, %v1029
    %v1038 = vmul.f32 %v993, %v1030
    %v1039 = vmul.f32 %v995, %v1031
    %v1040 = vmul.f32 %v997, %v1032
    %v1041 = vmul.f32 %v999, %v1033
    %v1042 = vmul.f32 %v1001, %v1034
    %v1043 = vmul.f32 %v1003, %v1035
    %v1044 = vpack.c.bf16 %v1036, %v1036
    %v1045 = vpack.c.bf16 %v1037, %v1037
    %v1046 = vpack.c.bf16 %v1038, %v1038
    %v1047 = vpack.c.bf16 %v1039, %v1039
    %v1048 = vpack.c.bf16 %v1040, %v1040
    %v1049 = vpack.c.bf16 %v1041, %v1041
    %v1050 = vpack.c.bf16 %v1042, %v1042
    %v1051 = vpack.c.bf16 %v1043, %v1043
    %v1052 = vpack.c.bf16 %v509, %v509
    %v1053 = vpack.c.bf16 %v512, %v512
    %v1054 = vpack.c.bf16 %v517, %v517
    %v1055 = vpack.c.bf16 %v520, %v520
    %v1056 = vpack.c.bf16 %v525, %v525
    %v1057 = vpack.c.bf16 %v528, %v528
    %v1058 = vpack.c.bf16 %v533, %v533
    %v1059 = vpack.c.bf16 %v536, %v536
    %1061 = vrot.lane.b32.xlu0 %v1052, 64
    %v1062 = vpop.permute.xlu0 %1061
    %v1064 = vsel %vm955, %v1044, 0
    %vm1066 = vcmask 1043456
    %v1068 = vsel %vm1066, %v1062, 0
    %1070 = vmatprep.subr.bf16.mxu0 0
    %1071 = vmatpush1.bf16.msra.mxu0 %v1068
    %1072 = vmatprep.subr.bf16.mxu0 0
    %1073 = vmatpush1.bf16.msra.mxu0 0
    %1074 = vmatprep.subr.bf16.mxu0 0
    %1075 = vmatpush1.bf16.msra.mxu0 0
    %1076 = vmatprep.subr.bf16.mxu0 0
    %1077 = vmatpush1.bf16.msra.mxu0 0
    %1078 = vmatprep.subr.bf16.mxu0 0
    %1079 = vmatpush1.bf16.msra.mxu0 0
    %1080 = vmatprep.subr.bf16.mxu0 0
    %1081 = vmatpush1.bf16.msra.mxu0 0
    %1082 = vmatprep.subr.bf16.mxu0 0
    %1083 = vmatpush1.bf16.msra.mxu0 0
    %1084 = vmatprep.subr.bf16.mxu0 0
    %1085 = vmatpush1.bf16.msra.mxu0 0
    %1086 = vmatprep.subr.bf16.mxu0 0
    %1087 = vmatpush1.bf16.msra.mxu0 0
    %1088 = vmatprep.subr.bf16.mxu0 0
    %1089 = vmatpush1.bf16.msra.mxu0 0
    %1090 = vmatprep.subr.bf16.mxu0 0
    %1091 = vmatpush1.bf16.msra.mxu0 0
    %1092 = vmatprep.subr.bf16.mxu0 0
    %1093 = vmatpush1.bf16.msra.mxu0 0
    %1094 = vmatprep.subr.bf16.mxu0 0
    %1095 = vmatpush1.bf16.msra.mxu0 0
    %1096 = vmatprep.subr.bf16.mxu0 0
    %1097 = vmatpush1.bf16.msra.mxu0 0
    %1098 = vmatprep.subr.bf16.mxu0 0
    %1099 = vmatpush1.bf16.msra.mxu0 0
    %1100 = vmatprep.subr.bf16.mxu0 0
    %1101 = vmatpush1.bf16.msra.mxu0 0
    %1102 = vmatprep.mubr.bf16.mxu0 0
    %1103 = vmatmul.mubr.bf16.gmra.mrb[0].mxu0 %v1064
    %v1104 = vpop.f32.mrb[0].mxu0
    %v1105 = vadd.f32 0.0, %v1104
    %v1106 = vpop.f32.mrb[0].mxu0
    %v1107 = vpop.f32.mrb[0].mxu0
    %v1108 = vpop.f32.mrb[0].mxu0
    %1109 = vdwg.mxu0
    %1111 = vrot.lane.b32.xlu0 %v1053, 64
    %v1112 = vpop.permute.xlu0 %1111
    %v1114 = vsel %vm955, %v1045, 0
    %v1117 = vsel %vm1066, %v1112, 0
    %1119 = vmatprep.subr.bf16.mxu0 0
    %1120 = vmatpush1.bf16.msra.mxu0 %v1117
    %1121 = vmatprep.subr.bf16.mxu0 0
    %1122 = vmatpush1.bf16.msra.mxu0 0
    %1123 = vmatprep.subr.bf16.mxu0 0
    %1124 = vmatpush1.bf16.msra.mxu0 0
    %1125 = vmatprep.subr.bf16.mxu0 0
    %1126 = vmatpush1.bf16.msra.mxu0 0
    %1127 = vmatprep.subr.bf16.mxu0 0
    %1128 = vmatpush1.bf16.msra.mxu0 0
    %1129 = vmatprep.subr.bf16.mxu0 0
    %1130 = vmatpush1.bf16.msra.mxu0 0
    %1131 = vmatprep.subr.bf16.mxu0 0
    %1132 = vmatpush1.bf16.msra.mxu0 0
    %1133 = vmatprep.subr.bf16.mxu0 0
    %1134 = vmatpush1.bf16.msra.mxu0 0
    %1135 = vmatprep.subr.bf16.mxu0 0
    %1136 = vmatpush1.bf16.msra.mxu0 0
    %1137 = vmatprep.subr.bf16.mxu0 0
    %1138 = vmatpush1.bf16.msra.mxu0 0
    %1139 = vmatprep.subr.bf16.mxu0 0
    %1140 = vmatpush1.bf16.msra.mxu0 0
    %1141 = vmatprep.subr.bf16.mxu0 0
    %1142 = vmatpush1.bf16.msra.mxu0 0
    %1143 = vmatprep.subr.bf16.mxu0 0
    %1144 = vmatpush1.bf16.msra.mxu0 0
    %1145 = vmatprep.subr.bf16.mxu0 0
    %1146 = vmatpush1.bf16.msra.mxu0 0
    %1147 = vmatprep.subr.bf16.mxu0 0
    %1148 = vmatpush1.bf16.msra.mxu0 0
    %1149 = vmatprep.subr.bf16.mxu0 0
    %1150 = vmatpush1.bf16.msra.mxu0 0
    %1151 = vmatprep.mubr.bf16.mxu0 0
    %1152 = vmatmul.mubr.bf16.gmra.mrb[0].mxu0 %v1114
    %v1153 = vpop.f32.mrb[0].mxu0
    %v1154 = vadd.f32 0.0, %v1153
    %v1155 = vpop.f32.mrb[0].mxu0
    %v1156 = vpop.f32.mrb[0].mxu0
    %v1157 = vpop.f32.mrb[0].mxu0
    %1158 = vdwg.mxu0
    %1160 = vrot.lane.b32.xlu0 %v1054, 64
    %v1161 = vpop.permute.xlu0 %1160
    %v1163 = vsel %vm955, %v1046, 0
    %v1166 = vsel %vm1066, %v1161, 0
    %1168 = vmatprep.subr.bf16.mxu0 0
    %1169 = vmatpush1.bf16.msra.mxu0 %v1166
    %1170 = vmatprep.subr.bf16.mxu0 0
    %1171 = vmatpush1.bf16.msra.mxu0 0
    %1172 = vmatprep.subr.bf16.mxu0 0
    %1173 = vmatpush1.bf16.msra.mxu0 0
    %1174 = vmatprep.subr.bf16.mxu0 0
    %1175 = vmatpush1.bf16.msra.mxu0 0
    %1176 = vmatprep.subr.bf16.mxu0 0
    %1177 = vmatpush1.bf16.msra.mxu0 0
    %1178 = vmatprep.subr.bf16.mxu0 0
    %1179 = vmatpush1.bf16.msra.mxu0 0
    %1180 = vmatprep.subr.bf16.mxu0 0
    %1181 = vmatpush1.bf16.msra.mxu0 0
    %1182 = vmatprep.subr.bf16.mxu0 0
    %1183 = vmatpush1.bf16.msra.mxu0 0
    %1184 = vmatprep.subr.bf16.mxu0 0
    %1185 = vmatpush1.bf16.msra.mxu0 0
    %1186 = vmatprep.subr.bf16.mxu0 0
    %1187 = vmatpush1.bf16.msra.mxu0 0
    %1188 = vmatprep.subr.bf16.mxu0 0
    %1189 = vmatpush1.bf16.msra.mxu0 0
    %1190 = vmatprep.subr.bf16.mxu0 0
    %1191 = vmatpush1.bf16.msra.mxu0 0
    %1192 = vmatprep.subr.bf16.mxu0 0
    %1193 = vmatpush1.bf16.msra.mxu0 0
    %1194 = vmatprep.subr.bf16.mxu0 0
    %1195 = vmatpush1.bf16.msra.mxu0 0
    %1196 = vmatprep.subr.bf16.mxu0 0
    %1197 = vmatpush1.bf16.msra.mxu0 0
    %1198 = vmatprep.subr.bf16.mxu0 0
    %1199 = vmatpush1.bf16.msra.mxu0 0
    %1200 = vmatprep.mubr.bf16.mxu0 0
    %1201 = vmatmul.mubr.bf16.gmra.mrb[0].mxu0 %v1163
    %v1202 = vpop.f32.mrb[0].mxu0
    %v1203 = vadd.f32 0.0, %v1202
    %v1204 = vpop.f32.mrb[0].mxu0
    %v1205 = vpop.f32.mrb[0].mxu0
    %v1206 = vpop.f32.mrb[0].mxu0
    %1207 = vdwg.mxu0
    %1209 = vrot.lane.b32.xlu0 %v1055, 64
    %v1210 = vpop.permute.xlu0 %1209
    %v1212 = vsel %vm955, %v1047, 0
    %v1215 = vsel %vm1066, %v1210, 0
    %1217 = vmatprep.subr.bf16.mxu0 0
    %1218 = vmatpush1.bf16.msra.mxu0 %v1215
    %1219 = vmatprep.subr.bf16.mxu0 0
    %1220 = vmatpush1.bf16.msra.mxu0 0
    %1221 = vmatprep.subr.bf16.mxu0 0
    %1222 = vmatpush1.bf16.msra.mxu0 0
    %1223 = vmatprep.subr.bf16.mxu0 0
    %1224 = vmatpush1.bf16.msra.mxu0 0
    %1225 = vmatprep.subr.bf16.mxu0 0
    %1226 = vmatpush1.bf16.msra.mxu0 0
    %1227 = vmatprep.subr.bf16.mxu0 0
    %1228 = vmatpush1.bf16.msra.mxu0 0
    %1229 = vmatprep.subr.bf16.mxu0 0
    %1230 = vmatpush1.bf16.msra.mxu0 0
    %1231 = vmatprep.subr.bf16.mxu0 0
    %1232 = vmatpush1.bf16.msra.mxu0 0
    %1233 = vmatprep.subr.bf16.mxu0 0
    %1234 = vmatpush1.bf16.msra.mxu0 0
    %1235 = vmatprep.subr.bf16.mxu0 0
    %1236 = vmatpush1.bf16.msra.mxu0 0
    %1237 = vmatprep.subr.bf16.mxu0 0
    %1238 = vmatpush1.bf16.msra.mxu0 0
    %1239 = vmatprep.subr.bf16.mxu0 0
    %1240 = vmatpush1.bf16.msra.mxu0 0
    %1241 = vmatprep.subr.bf16.mxu0 0
    %1242 = vmatpush1.bf16.msra.mxu0 0
    %1243 = vmatprep.subr.bf16.mxu0 0
    %1244 = vmatpush1.bf16.msra.mxu0 0
    %1245 = vmatprep.subr.bf16.mxu0 0
    %1246 = vmatpush1.bf16.msra.mxu0 0
    %1247 = vmatprep.subr.bf16.mxu0 0
    %1248 = vmatpush1.bf16.msra.mxu0 0
    %1249 = vmatprep.mubr.bf16.mxu0 0
    %1250 = vmatmul.mubr.bf16.gmra.mrb[0].mxu0 %v1212
    %v1251 = vpop.f32.mrb[0].mxu0
    %v1252 = vadd.f32 0.0, %v1251
    %v1253 = vpop.f32.mrb[0].mxu0
    %v1254 = vpop.f32.mrb[0].mxu0
    %v1255 = vpop.f32.mrb[0].mxu0
    %1256 = vdwg.mxu0
    %1258 = vrot.lane.b32.xlu0 %v1056, 64
    %v1259 = vpop.permute.xlu0 %1258
    %v1261 = vsel %vm955, %v1048, 0
    %v1264 = vsel %vm1066, %v1259, 0
    %1266 = vmatprep.subr.bf16.mxu0 0
    %1267 = vmatpush1.bf16.msra.mxu0 %v1264
    %1268 = vmatprep.subr.bf16.mxu0 0
    %1269 = vmatpush1.bf16.msra.mxu0 0
    %1270 = vmatprep.subr.bf16.mxu0 0
    %1271 = vmatpush1.bf16.msra.mxu0 0
    %1272 = vmatprep.subr.bf16.mxu0 0
    %1273 = vmatpush1.bf16.msra.mxu0 0
    %1274 = vmatprep.subr.bf16.mxu0 0
    %1275 = vmatpush1.bf16.msra.mxu0 0
    %1276 = vmatprep.subr.bf16.mxu0 0
    %1277 = vmatpush1.bf16.msra.mxu0 0
    %1278 = vmatprep.subr.bf16.mxu0 0
    %1279 = vmatpush1.bf16.msra.mxu0 0
    %1280 = vmatprep.subr.bf16.mxu0 0
    %1281 = vmatpush1.bf16.msra.mxu0 0
    %1282 = vmatprep.subr.bf16.mxu0 0
    %1283 = vmatpush1.bf16.msra.mxu0 0
    %1284 = vmatprep.subr.bf16.mxu0 0
    %1285 = vmatpush1.bf16.msra.mxu0 0
    %1286 = vmatprep.subr.bf16.mxu0 0
    %1287 = vmatpush1.bf16.msra.mxu0 0
    %1288 = vmatprep.subr.bf16.mxu0 0
    %1289 = vmatpush1.bf16.msra.mxu0 0
    %1290 = vmatprep.subr.bf16.mxu0 0
    %1291 = vmatpush1.bf16.msra.mxu0 0
    %1292 = vmatprep.subr.bf16.mxu0 0
    %1293 = vmatpush1.bf16.msra.mxu0 0
    %1294 = vmatprep.subr.bf16.mxu0 0
    %1295 = vmatpush1.bf16.msra.mxu0 0
    %1296 = vmatprep.subr.bf16.mxu0 0
    %1297 = vmatpush1.bf16.msra.mxu0 0
    %1298 = vmatprep.mubr.bf16.mxu0 0
    %1299 = vmatmul.mubr.bf16.gmra.mrb[0].mxu0 %v1261
    %v1300 = vpop.f32.mrb[0].mxu0
    %v1301 = vadd.f32 0.0, %v1300
    %v1302 = vpop.f32.mrb[0].mxu0
    %v1303 = vpop.f32.mrb[0].mxu0
    %v1304 = vpop.f32.mrb[0].mxu0
    %1305 = vdwg.mxu0
    %1307 = vrot.lane.b32.xlu0 %v1057, 64
    %v1308 = vpop.permute.xlu0 %1307
    %v1310 = vsel %vm955, %v1049, 0
    %v1313 = vsel %vm1066, %v1308, 0
    %1315 = vmatprep.subr.bf16.mxu0 0
    %1316 = vmatpush1.bf16.msra.mxu0 %v1313
    %1317 = vmatprep.subr.bf16.mxu0 0
    %1318 = vmatpush1.bf16.msra.mxu0 0
    %1319 = vmatprep.subr.bf16.mxu0 0
    %1320 = vmatpush1.bf16.msra.mxu0 0
    %1321 = vmatprep.subr.bf16.mxu0 0
    %1322 = vmatpush1.bf16.msra.mxu0 0
    %1323 = vmatprep.subr.bf16.mxu0 0
    %1324 = vmatpush1.bf16.msra.mxu0 0
    %1325 = vmatprep.subr.bf16.mxu0 0
    %1326 = vmatpush1.bf16.msra.mxu0 0
    %1327 = vmatprep.subr.bf16.mxu0 0
    %1328 = vmatpush1.bf16.msra.mxu0 0
    %1329 = vmatprep.subr.bf16.mxu0 0
    %1330 = vmatpush1.bf16.msra.mxu0 0
    %1331 = vmatprep.subr.bf16.mxu0 0
    %1332 = vmatpush1.bf16.msra.mxu0 0
    %1333 = vmatprep.subr.bf16.mxu0 0
    %1334 = vmatpush1.bf16.msra.mxu0 0
    %1335 = vmatprep.subr.bf16.mxu0 0
    %1336 = vmatpush1.bf16.msra.mxu0 0
    %1337 = vmatprep.subr.bf16.mxu0 0
    %1338 = vmatpush1.bf16.msra.mxu0 0
    %1339 = vmatprep.subr.bf16.mxu0 0
    %1340 = vmatpush1.bf16.msra.mxu0 0
    %1341 = vmatprep.subr.bf16.mxu0 0
    %1342 = vmatpush1.bf16.msra.mxu0 0
    %1343 = vmatprep.subr.bf16.mxu0 0
    %1344 = vmatpush1.bf16.msra.mxu0 0
    %1345 = vmatprep.subr.bf16.mxu0 0
    %1346 = vmatpush1.bf16.msra.mxu0 0
    %1347 = vmatprep.mubr.bf16.mxu0 0
    %1348 = vmatmul.mubr.bf16.gmra.mrb[0].mxu0 %v1310
    %v1349 = vpop.f32.mrb[0].mxu0
    %v1350 = vadd.f32 0.0, %v1349
    %v1351 = vpop.f32.mrb[0].mxu0
    %v1352 = vpop.f32.mrb[0].mxu0
    %v1353 = vpop.f32.mrb[0].mxu0
    %1354 = vdwg.mxu0
    %1356 = vrot.lane.b32.xlu0 %v1058, 64
    %v1357 = vpop.permute.xlu0 %1356
    %v1359 = vsel %vm955, %v1050, 0
    %v1362 = vsel %vm1066, %v1357, 0
    %1364 = vmatprep.subr.bf16.mxu0 0
    %1365 = vmatpush1.bf16.msra.mxu0 %v1362
    %1366 = vmatprep.subr.bf16.mxu0 0
    %1367 = vmatpush1.bf16.msra.mxu0 0
    %1368 = vmatprep.subr.bf16.mxu0 0
    %1369 = vmatpush1.bf16.msra.mxu0 0
    %1370 = vmatprep.subr.bf16.mxu0 0
    %1371 = vmatpush1.bf16.msra.mxu0 0
    %1372 = vmatprep.subr.bf16.mxu0 0
    %1373 = vmatpush1.bf16.msra.mxu0 0
    %1374 = vmatprep.subr.bf16.mxu0 0
    %1375 = vmatpush1.bf16.msra.mxu0 0
    %1376 = vmatprep.subr.bf16.mxu0 0
    %1377 = vmatpush1.bf16.msra.mxu0 0
    %1378 = vmatprep.subr.bf16.mxu0 0
    %1379 = vmatpush1.bf16.msra.mxu0 0
    %1380 = vmatprep.subr.bf16.mxu0 0
    %1381 = vmatpush1.bf16.msra.mxu0 0
    %1382 = vmatprep.subr.bf16.mxu0 0
    %1383 = vmatpush1.bf16.msra.mxu0 0
    %1384 = vmatprep.subr.bf16.mxu0 0
    %1385 = vmatpush1.bf16.msra.mxu0 0
    %1386 = vmatprep.subr.bf16.mxu0 0
    %1387 = vmatpush1.bf16.msra.mxu0 0
    %1388 = vmatprep.subr.bf16.mxu0 0
    %1389 = vmatpush1.bf16.msra.mxu0 0
    %1390 = vmatprep.subr.bf16.mxu0 0
    %1391 = vmatpush1.bf16.msra.mxu0 0
    %1392 = vmatprep.subr.bf16.mxu0 0
    %1393 = vmatpush1.bf16.msra.mxu0 0
    %1394 = vmatprep.subr.bf16.mxu0 0
    %1395 = vmatpush1.bf16.msra.mxu0 0
    %1396 = vmatprep.mubr.bf16.mxu0 0
    %1397 = vmatmul.mubr.bf16.gmra.mrb[0].mxu0 %v1359
    %v1398 = vpop.f32.mrb[0].mxu0
    %v1399 = vadd.f32 0.0, %v1398
    %v1400 = vpop.f32.mrb[0].mxu0
    %v1401 = vpop.f32.mrb[0].mxu0
    %v1402 = vpop.f32.mrb[0].mxu0
    %1403 = vdwg.mxu0
    %1405 = vrot.lane.b32.xlu0 %v1059, 64
    %v1406 = vpop.permute.xlu0 %1405
    %v1408 = vsel %vm955, %v1051, 0
    %v1411 = vsel %vm1066, %v1406, 0
    %1413 = vmatprep.subr.bf16.mxu0 0
    %1414 = vmatpush1.bf16.msra.mxu0 %v1411
    %1415 = vmatprep.subr.bf16.mxu0 0
    %1416 = vmatpush1.bf16.msra.mxu0 0
    %1417 = vmatprep.subr.bf16.mxu0 0
    %1418 = vmatpush1.bf16.msra.mxu0 0
    %1419 = vmatprep.subr.bf16.mxu0 0
    %1420 = vmatpush1.bf16.msra.mxu0 0
    %1421 = vmatprep.subr.bf16.mxu0 0
    %1422 = vmatpush1.bf16.msra.mxu0 0
    %1423 = vmatprep.subr.bf16.mxu0 0
    %1424 = vmatpush1.bf16.msra.mxu0 0
    %1425 = vmatprep.subr.bf16.mxu0 0
    %1426 = vmatpush1.bf16.msra.mxu0 0
    %1427 = vmatprep.subr.bf16.mxu0 0
    %1428 = vmatpush1.bf16.msra.mxu0 0
    %1429 = vmatprep.subr.bf16.mxu0 0
    %1430 = vmatpush1.bf16.msra.mxu0 0
    %1431 = vmatprep.subr.bf16.mxu0 0
    %1432 = vmatpush1.bf16.msra.mxu0 0
    %1433 = vmatprep.subr.bf16.mxu0 0
    %1434 = vmatpush1.bf16.msra.mxu0 0
    %1435 = vmatprep.subr.bf16.mxu0 0
    %1436 = vmatpush1.bf16.msra.mxu0 0
    %1437 = vmatprep.subr.bf16.mxu0 0
    %1438 = vmatpush1.bf16.msra.mxu0 0
    %1439 = vmatprep.subr.bf16.mxu0 0
    %1440 = vmatpush1.bf16.msra.mxu0 0
    %1441 = vmatprep.subr.bf16.mxu0 0
    %1442 = vmatpush1.bf16.msra.mxu0 0
    %1443 = vmatprep.subr.bf16.mxu0 0
    %1444 = vmatpush1.bf16.msra.mxu0 0
    %1445 = vmatprep.mubr.bf16.mxu0 0
    %1446 = vmatmul.mubr.bf16.gmra.mrb[0].mxu0 %v1408
    %v1447 = vpop.f32.mrb[0].mxu0
    %v1448 = vadd.f32 0.0, %v1447
    %v1449 = vpop.f32.mrb[0].mxu0
    %v1450 = vpop.f32.mrb[0].mxu0
    %v1451 = vpop.f32.mrb[0].mxu0
    %1452 = vdwg.mxu0
    %v1453 = vsel %vm102, %v1105, -inf
    %1454 = vmax.xlane.f32.xlu0 %v1453
    %v1455 = vpop.xlane.xlu0 %1454
    %v1456 = vsel %vm102, %v1154, -inf
    %1457 = vmax.xlane.f32.xlu0 %v1456
    %v1458 = vpop.xlane.xlu0 %1457
    %v1459 = vsel %vm102, %v1203, -inf
    %1460 = vmax.xlane.f32.xlu0 %v1459
    %v1461 = vpop.xlane.xlu0 %1460
    %v1462 = vsel %vm102, %v1252, -inf
    %1463 = vmax.xlane.f32.xlu0 %v1462
    %v1464 = vpop.xlane.xlu0 %1463
    %v1465 = vsel %vm102, %v1301, -inf
    %1466 = vmax.xlane.f32.xlu0 %v1465
    %v1467 = vpop.xlane.xlu0 %1466
    %v1468 = vsel %vm102, %v1350, -inf
    %1469 = vmax.xlane.f32.xlu0 %v1468
    %v1470 = vpop.xlane.xlu0 %1469
    %v1471 = vsel %vm102, %v1399, -inf
    %1472 = vmax.xlane.f32.xlu0 %v1471
    %v1473 = vpop.xlane.xlu0 %1472
    %v1474 = vsel %vm102, %v1448, -inf
    %1475 = vmax.xlane.f32.xlu0 %v1474
    %v1476 = vpop.xlane.xlu0 %1475
    %v1477 = vsub.f32 %v1105, %v1455
    %v1478 = vsub.f32 %v1154, %v1458
    %v1479 = vsub.f32 %v1203, %v1461
    %v1480 = vsub.f32 %v1252, %v1464
    %v1481 = vsub.f32 %v1301, %v1467
    %v1482 = vsub.f32 %v1350, %v1470
    %v1483 = vsub.f32 %v1399, %v1473
    %v1484 = vsub.f32 %v1448, %v1476
    %v1485 = vmul.f32 %v1477, 1.442695
    %v1486 = vpow.pop %v1485
    %v1487 = vmul.f32 %v1478, 1.442695
    %v1488 = vpow.pop %v1487
    %v1489 = vmul.f32 %v1479, 1.442695
    %v1490 = vpow.pop %v1489
    %v1491 = vmul.f32 %v1480, 1.442695
    %v1492 = vpow.pop %v1491
    %v1493 = vmul.f32 %v1481, 1.442695
    %v1494 = vpow.pop %v1493
    %v1495 = vmul.f32 %v1482, 1.442695
    %v1496 = vpow.pop %v1495
    %v1497 = vmul.f32 %v1483, 1.442695
    %v1498 = vpow.pop %v1497
    %v1499 = vmul.f32 %v1484, 1.442695
    %v1500 = vpow.pop %v1499
    %v1501 = vsel %vm102, %v1486, 0.0
    %1502 = vadd.xlane.f32.xlu0 %v1501
    %v1503 = vpop.xlane.xlu0 %1502
    %v1504 = vsel %vm102, %v1488, 0.0
    %1505 = vadd.xlane.f32.xlu0 %v1504
    %v1506 = vpop.xlane.xlu0 %1505
    %v1507 = vsel %vm102, %v1490, 0.0
    %1508 = vadd.xlane.f32.xlu0 %v1507
    %v1509 = vpop.xlane.xlu0 %1508
    %v1510 = vsel %vm102, %v1492, 0.0
    %1511 = vadd.xlane.f32.xlu0 %v1510
    %v1512 = vpop.xlane.xlu0 %1511
    %v1513 = vsel %vm102, %v1494, 0.0
    %1514 = vadd.xlane.f32.xlu0 %v1513
    %v1515 = vpop.xlane.xlu0 %1514
    %v1516 = vsel %vm102, %v1496, 0.0
    %1517 = vadd.xlane.f32.xlu0 %v1516
    %v1518 = vpop.xlane.xlu0 %1517
    %v1519 = vsel %vm102, %v1498, 0.0
    %1520 = vadd.xlane.f32.xlu0 %v1519
    %v1521 = vpop.xlane.xlu0 %1520
    %v1522 = vsel %vm102, %v1500, 0.0
    %1523 = vadd.xlane.f32.xlu0 %v1522
    %v1524 = vpop.xlane.xlu0 %1523
    %v1525 = vrcp.pop %v1503
    %v1526 = vmul.f32 %v1486, %v1525
    %v1527 = vrcp.pop %v1506
    %v1528 = vmul.f32 %v1488, %v1527
    %v1529 = vrcp.pop %v1509
    %v1530 = vmul.f32 %v1490, %v1529
    %v1531 = vrcp.pop %v1512
    %v1532 = vmul.f32 %v1492, %v1531
    %v1533 = vrcp.pop %v1515
    %v1534 = vmul.f32 %v1494, %v1533
    %v1535 = vrcp.pop %v1518
    %v1536 = vmul.f32 %v1496, %v1535
    %v1537 = vrcp.pop %v1521
    %v1538 = vmul.f32 %v1498, %v1537
    %v1539 = vrcp.pop %v1524
    %v1540 = vmul.f32 %v1500, %v1539
    %1549 = vrot.lane.b32.xlu0 %v509, 64
    %v1550 = vpop.permute.xlu0 %1549
    %1551 = vrot.lane.b32.xlu0 %v512, 64
    %v1552 = vpop.permute.xlu0 %1551
    %1553 = vrot.lane.b32.xlu0 %v517, 64
    %v1554 = vpop.permute.xlu0 %1553
    %1555 = vrot.lane.b32.xlu0 %v520, 64
    %v1556 = vpop.permute.xlu0 %1555
    %1557 = vrot.lane.b32.xlu0 %v525, 64
    %v1558 = vpop.permute.xlu0 %1557
    %1559 = vrot.lane.b32.xlu0 %v528, 64
    %v1560 = vpop.permute.xlu0 %1559
    %1561 = vrot.lane.b32.xlu0 %v533, 64
    %v1562 = vpop.permute.xlu0 %1561
    %1563 = vrot.lane.b32.xlu0 %v536, 64
    %v1564 = vpop.permute.xlu0 %1563
    %v1573 = vmul.f32 %v1526, %v1550
    %v1574 = vmul.f32 %v1528, %v1552
    %v1575 = vmul.f32 %v1530, %v1554
    %v1576 = vmul.f32 %v1532, %v1556
    %v1577 = vmul.f32 %v1534, %v1558
    %v1578 = vmul.f32 %v1536, %v1560
    %v1579 = vmul.f32 %v1538, %v1562
    %v1580 = vmul.f32 %v1540, %v1564
    %v1581 = vcombine.low %v1573, %v1575
    %v1582 = vcombine.high %v1573, %v1575
    %v1584 = vunpack.c.l.s4 1983009808
    %v1585 = vunpack.c.0.s8 %v1584
    %v1586 = vlaneseq
    %v1587 = vshrl.u32 %v1586, 7
    %v1588 = vsub.s32 %v1585, %v1587
    %v1589 = vrot.slane %v1581, %v1588
    %v1591 = vunpack.c.l.s4 1983009808
    %v1592 = vunpack.c.0.s8 %v1591
    %v1593 = vlaneseq
    %v1594 = vshrl.u32 %v1593, 7
    %v1595 = vsub.s32 %v1592, %v1594
    %v1596 = vrot.slane %v1582, %v1595
    %v1597 = vcombine.low %v1574, %v1576
    %v1598 = vcombine.high %v1574, %v1576
    %v1600 = vunpack.c.l.s4 1983009808
    %v1601 = vunpack.c.0.s8 %v1600
    %v1602 = vlaneseq
    %v1603 = vshrl.u32 %v1602, 7
    %v1604 = vsub.s32 %v1601, %v1603
    %v1605 = vrot.slane %v1597, %v1604
    %v1607 = vunpack.c.l.s4 1983009808
    %v1608 = vunpack.c.0.s8 %v1607
    %v1609 = vlaneseq
    %v1610 = vshrl.u32 %v1609, 7
    %v1611 = vsub.s32 %v1608, %v1610
    %v1612 = vrot.slane %v1598, %v1611
    %v1613 = vcombine.low %v1577, %v1579
    %v1614 = vcombine.high %v1577, %v1579
    %v1616 = vunpack.c.l.s4 1983009808
    %v1617 = vunpack.c.0.s8 %v1616
    %v1618 = vlaneseq
    %v1619 = vshrl.u32 %v1618, 7
    %v1620 = vsub.s32 %v1617, %v1619
    %v1621 = vrot.slane %v1613, %v1620
    %v1623 = vunpack.c.l.s4 1983009808
    %v1624 = vunpack.c.0.s8 %v1623
    %v1625 = vlaneseq
    %v1626 = vshrl.u32 %v1625, 7
    %v1627 = vsub.s32 %v1624, %v1626
    %v1628 = vrot.slane %v1614, %v1627
    %v1629 = vcombine.low %v1578, %v1580
    %v1630 = vcombine.high %v1578, %v1580
    %v1632 = vunpack.c.l.s4 1983009808
    %v1633 = vunpack.c.0.s8 %v1632
    %v1634 = vlaneseq
    %v1635 = vshrl.u32 %v1634, 7
    %v1636 = vsub.s32 %v1633, %v1635
    %v1637 = vrot.slane %v1629, %v1636
    %v1639 = vunpack.c.l.s4 1983009808
    %v1640 = vunpack.c.0.s8 %v1639
    %v1641 = vlaneseq
    %v1642 = vshrl.u32 %v1641, 7
    %v1643 = vsub.s32 %v1640, %v1642
    %v1644 = vrot.slane %v1630, %v1643
    %v1645 = vcombine.low %v1589, %v1605
    %v1646 = vcombine.high %v1589, %v1605
    %v1648 = vunpack.c.l.s4 1934713408
    %v1649 = vunpack.c.0.s8 %v1648
    %v1650 = vlaneseq
    %v1651 = vshrl.u32 %v1650, 7
    %v1652 = vsub.s32 %v1649, %v1651
    %v1653 = vrot.slane %v1645, %v1652
    %v1655 = vunpack.c.l.s4 1934713408
    %v1656 = vunpack.c.0.s8 %v1655
    %v1657 = vlaneseq
    %v1658 = vshrl.u32 %v1657, 7
    %v1659 = vsub.s32 %v1656, %v1658
    %v1660 = vrot.slane %v1646, %v1659
    %v1661 = vcombine.low %v1596, %v1612
    %v1662 = vcombine.high %v1596, %v1612
    %v1664 = vunpack.c.l.s4 1934713408
    %v1665 = vunpack.c.0.s8 %v1664
    %v1666 = vlaneseq
    %v1667 = vshrl.u32 %v1666, 7
    %v1668 = vsub.s32 %v1665, %v1667
    %v1669 = vrot.slane %v1661, %v1668
    %v1671 = vunpack.c.l.s4 1934713408
    %v1672 = vunpack.c.0.s8 %v1671
    %v1673 = vlaneseq
    %v1674 = vshrl.u32 %v1673, 7
    %v1675 = vsub.s32 %v1672, %v1674
    %v1676 = vrot.slane %v1662, %v1675
    %v1677 = vcombine.low %v1621, %v1637
    %v1678 = vcombine.high %v1621, %v1637
    %v1680 = vunpack.c.l.s4 1934713408
    %v1681 = vunpack.c.0.s8 %v1680
    %v1682 = vlaneseq
    %v1683 = vshrl.u32 %v1682, 7
    %v1684 = vsub.s32 %v1681, %v1683
    %v1685 = vrot.slane %v1677, %v1684
    %v1687 = vunpack.c.l.s4 1934713408
    %v1688 = vunpack.c.0.s8 %v1687
    %v1689 = vlaneseq
    %v1690 = vshrl.u32 %v1689, 7
    %v1691 = vsub.s32 %v1688, %v1690
    %v1692 = vrot.slane %v1678, %v1691
    %v1693 = vcombine.low %v1628, %v1644
    %v1694 = vcombine.high %v1628, %v1644
    %v1696 = vunpack.c.l.s4 1934713408
    %v1697 = vunpack.c.0.s8 %v1696
    %v1698 = vlaneseq
    %v1699 = vshrl.u32 %v1698, 7
    %v1700 = vsub.s32 %v1697, %v1699
    %v1701 = vrot.slane %v1693, %v1700
    %v1703 = vunpack.c.l.s4 1934713408
    %v1704 = vunpack.c.0.s8 %v1703
    %v1705 = vlaneseq
    %v1706 = vshrl.u32 %v1705, 7
    %v1707 = vsub.s32 %v1704, %v1706
    %v1708 = vrot.slane %v1694, %v1707
    %v1709 = vcombine.low %v1653, %v1685
    %v1710 = vcombine.high %v1653, %v1685
    %v1711 = vcombine.low %v1660, %v1692
    %v1712 = vcombine.high %v1660, %v1692
    %v1713 = vcombine.low %v1669, %v1701
    %v1714 = vcombine.high %v1669, %v1701
    %v1715 = vcombine.low %v1676, %v1708
    %v1716 = vcombine.high %v1676, %v1708
    %1718 = vrot.lane.b32.xlu0 %v1710, 32
    %v1719 = vpop.permute.xlu0 %1718
    %1722 = vrot.lane.b32.xlu0 %v1711, 64
    %v1723 = vpop.permute.xlu0 %1722
    %1726 = vrot.lane.b32.xlu0 %v1712, 96
    %v1727 = vpop.permute.xlu0 %1726
    %1730 = vrot.lane.b32.xlu0 %v1714, 32
    %v1731 = vpop.permute.xlu0 %1730
    %1734 = vrot.lane.b32.xlu0 %v1715, 64
    %v1735 = vpop.permute.xlu0 %1734
    %1738 = vrot.lane.b32.xlu0 %v1716, 96
    %v1739 = vpop.permute.xlu0 %1738
    %v1741 = vsel %vm102, %v1709, %v1719
    %vm1742 = vcmask 523264
    %v1743 = vsel %vm1742, %v1741, %v1723
    %v1744 = vsel %vm282, %v1743, %v1727
    %v1745 = vsel %vm102, %v1713, %v1731
    %v1746 = vsel %vm1742, %v1745, %v1735
    %v1747 = vsel %vm282, %v1746, %v1739
    %1748 = vst [vmem:[#allocation5] sm:$0xff] %v1744
    %1749 = vst [vmem:[#allocation5 + $0x8] sm:$0xff] %v1747
    %v1750 = vcombine.low %v1526, %v1530
    %v1751 = vcombine.high %v1526, %v1530
    %v1753 = vunpack.c.l.s4 1983009808
    %v1754 = vunpack.c.0.s8 %v1753
    %v1755 = vlaneseq
    %v1756 = vshrl.u32 %v1755, 7
    %v1757 = vsub.s32 %v1754, %v1756
    %v1758 = vrot.slane %v1750, %v1757
    %v1760 = vunpack.c.l.s4 1983009808
    %v1761 = vunpack.c.0.s8 %v1760
    %v1762 = vlaneseq
    %v1763 = vshrl.u32 %v1762, 7
    %v1764 = vsub.s32 %v1761, %v1763
    %v1765 = vrot.slane %v1751, %v1764
    %v1766 = vcombine.low %v1528, %v1532
    %v1767 = vcombine.high %v1528, %v1532
    %v1769 = vunpack.c.l.s4 1983009808
    %v1770 = vunpack.c.0.s8 %v1769
    %v1771 = vlaneseq
    %v1772 = vshrl.u32 %v1771, 7
    %v1773 = vsub.s32 %v1770, %v1772
    %v1774 = vrot.slane %v1766, %v1773
    %v1776 = vunpack.c.l.s4 1983009808
    %v1777 = vunpack.c.0.s8 %v1776
    %v1778 = vlaneseq
    %v1779 = vshrl.u32 %v1778, 7
    %v1780 = vsub.s32 %v1777, %v1779
    %v1781 = vrot.slane %v1767, %v1780
    %v1782 = vcombine.low %v1534, %v1538
    %v1783 = vcombine.high %v1534, %v1538
    %v1785 = vunpack.c.l.s4 1983009808
    %v1786 = vunpack.c.0.s8 %v1785
    %v1787 = vlaneseq
    %v1788 = vshrl.u32 %v1787, 7
    %v1789 = vsub.s32 %v1786, %v1788
    %v1790 = vrot.slane %v1782, %v1789
    %v1792 = vunpack.c.l.s4 1983009808
    %v1793 = vunpack.c.0.s8 %v1792
    %v1794 = vlaneseq
    %v1795 = vshrl.u32 %v1794, 7
    %v1796 = vsub.s32 %v1793, %v1795
    %v1797 = vrot.slane %v1783, %v1796
    %v1798 = vcombine.low %v1536, %v1540
    %v1799 = vcombine.high %v1536, %v1540
    %v1801 = vunpack.c.l.s4 1983009808
    %v1802 = vunpack.c.0.s8 %v1801
    %v1803 = vlaneseq
    %v1804 = vshrl.u32 %v1803, 7
    %v1805 = vsub.s32 %v1802, %v1804
    %v1806 = vrot.slane %v1798, %v1805
    %v1808 = vunpack.c.l.s4 1983009808
    %v1809 = vunpack.c.0.s8 %v1808
    %v1810 = vlaneseq
    %v1811 = vshrl.u32 %v1810, 7
    %v1812 = vsub.s32 %v1809, %v1811
    %v1813 = vrot.slane %v1799, %v1812
    %v1814 = vcombine.low %v1758, %v1774
    %v1815 = vcombine.high %v1758, %v1774
    %v1817 = vunpack.c.l.s4 1934713408
    %v1818 = vunpack.c.0.s8 %v1817
    %v1819 = vlaneseq
    %v1820 = vshrl.u32 %v1819, 7
    %v1821 = vsub.s32 %v1818, %v1820
    %v1822 = vrot.slane %v1814, %v1821
    %v1824 = vunpack.c.l.s4 1934713408
    %v1825 = vunpack.c.0.s8 %v1824
    %v1826 = vlaneseq
    %v1827 = vshrl.u32 %v1826, 7
    %v1828 = vsub.s32 %v1825, %v1827
    %v1829 = vrot.slane %v1815, %v1828
    %v1830 = vcombine.low %v1765, %v1781
    %v1831 = vcombine.high %v1765, %v1781
    %v1833 = vunpack.c.l.s4 1934713408
    %v1834 = vunpack.c.0.s8 %v1833
    %v1835 = vlaneseq
    %v1836 = vshrl.u32 %v1835, 7
    %v1837 = vsub.s32 %v1834, %v1836
    %v1838 = vrot.slane %v1830, %v1837
    %v1840 = vunpack.c.l.s4 1934713408
    %v1841 = vunpack.c.0.s8 %v1840
    %v1842 = vlaneseq
    %v1843 = vshrl.u32 %v1842, 7
    %v1844 = vsub.s32 %v1841, %v1843
    %v1845 = vrot.slane %v1831, %v1844
    %v1846 = vcombine.low %v1790, %v1806
    %v1847 = vcombine.high %v1790, %v1806
    %v1849 = vunpack.c.l.s4 1934713408
    %v1850 = vunpack.c.0.s8 %v1849
    %v1851 = vlaneseq
    %v1852 = vshrl.u32 %v1851, 7
    %v1853 = vsub.s32 %v1850, %v1852
    %v1854 = vrot.slane %v1846, %v1853
    %v1856 = vunpack.c.l.s4 1934713408
    %v1857 = vunpack.c.0.s8 %v1856
    %v1858 = vlaneseq
    %v1859 = vshrl.u32 %v1858, 7
    %v1860 = vsub.s32 %v1857, %v1859
    %v1861 = vrot.slane %v1847, %v1860
    %v1862 = vcombine.low %v1797, %v1813
    %v1863 = vcombine.high %v1797, %v1813
    %v1865 = vunpack.c.l.s4 1934713408
    %v1866 = vunpack.c.0.s8 %v1865
    %v1867 = vlaneseq
    %v1868 = vshrl.u32 %v1867, 7
    %v1869 = vsub.s32 %v1866, %v1868
    %v1870 = vrot.slane %v1862, %v1869
    %v1872 = vunpack.c.l.s4 1934713408
    %v1873 = vunpack.c.0.s8 %v1872
    %v1874 = vlaneseq
    %v1875 = vshrl.u32 %v1874, 7
    %v1876 = vsub.s32 %v1873, %v1875
    %v1877 = vrot.slane %v1863, %v1876
    %v1878 = vcombine.low %v1822, %v1854
    %v1879 = vcombine.high %v1822, %v1854
    %v1880 = vcombine.low %v1829, %v1861
    %v1881 = vcombine.high %v1829, %v1861
    %v1882 = vcombine.low %v1838, %v1870
    %v1883 = vcombine.high %v1838, %v1870
    %v1884 = vcombine.low %v1845, %v1877
    %v1885 = vcombine.high %v1845, %v1877
    %1887 = vrot.lane.b32.xlu0 %v1879, 32
    %v1888 = vpop.permute.xlu0 %1887
    %1891 = vrot.lane.b32.xlu0 %v1880, 64
    %v1892 = vpop.permute.xlu0 %1891
    %1895 = vrot.lane.b32.xlu0 %v1881, 96
    %v1896 = vpop.permute.xlu0 %1895
    %1899 = vrot.lane.b32.xlu0 %v1883, 32
    %v1900 = vpop.permute.xlu0 %1899
    %1903 = vrot.lane.b32.xlu0 %v1884, 64
    %v1904 = vpop.permute.xlu0 %1903
    %1907 = vrot.lane.b32.xlu0 %v1885, 96
    %v1908 = vpop.permute.xlu0 %1907
    %v1910 = vsel %vm102, %v1878, %v1888
    %v1911 = vsel %vm1742, %v1910, %v1892
    %v1912 = vsel %vm282, %v1911, %v1896
    %v1913 = vsel %vm102, %v1882, %v1900
    %v1914 = vsel %vm1742, %v1913, %v1904
    %v1915 = vsel %vm282, %v1914, %v1908
    %1916 = vst [vmem:[#allocation6] sm:$0xff] %v1912
    %1917 = vst [vmem:[#allocation6 + $0x8] sm:$0xff] %v1915
    // Predicated region
    $region26: #{tpu_custom_call.1} parent=1 // pred_check
      _
    $region27: #{tpu_custom_call.1} parent=1 // pred_check_branch
      %1919 = sbr.rel (0) target = $region29
    $region28: #{tpu_custom_call.1} parent=1 // pred_region
      %s1921 = ssub.s32 256, 256
      %1922 = vsyncadd [#allocation4], %s1921
      %s1924 = sshll.u32 [#allocation5], 4
      %s1925 = int_to_ptr.vmem [resolvable:$true] %s1924
      %1927 = dma.vmem_to_hbm [thread:$0]  %s1925, 256, %s5, [#allocation4]
    $region29: #{tpu_custom_call.1} parent=1 // pred_fallthru
      _
    // Predicated region
    $region30: #{tpu_custom_call.1} parent=1 // pred_check
      _
    $region31: #{tpu_custom_call.1} parent=1 // pred_check_branch
      %1929 = sbr.rel (0) target = $region33
    $region32: #{tpu_custom_call.1} parent=1 // pred_region
      %s1931 = ssub.s32 256, 256
      %1932 = vsyncadd [#allocation7], %s1931
      %s1934 = sshll.u32 [#allocation6], 4
      %s1935 = int_to_ptr.vmem [resolvable:$true] %s1934
      %1937 = dma.vmem_to_hbm [thread:$0]  %s1935, 256, %s6, [#allocation7]
    $region33: #{tpu_custom_call.1} parent=1 // pred_fallthru
      _
    // Predicated region
    $region34: #{tpu_custom_call.1} parent=1 // pred_check
      _
    $region35: #{tpu_custom_call.1} parent=1 // pred_check_branch
      %1939 = sbr.rel (0) target = $region37
    $region36: #{tpu_custom_call.1} parent=1 // pred_region
      %1940 = dma.done [#allocation4], 256
    $region37: #{tpu_custom_call.1} parent=1 // pred_fallthru
      _
    // Predicated region
    $region38: #{tpu_custom_call.1} parent=1 // pred_check
      _
    $region39: #{tpu_custom_call.1} parent=1 // pred_check_branch
      %1942 = sbr.rel (0) target = $region41
    $region40: #{tpu_custom_call.1} parent=1 // pred_region
      %1943 = dma.done [#allocation7], 256
    $region41: #{tpu_custom_call.1} parent=1 // pred_fallthru
      _
    %1944 = vsyncpa [#allocation3], 1
    %1945 = vsyncpa [#allocation4], 1
    %1946 = vsyncpa [#allocation7], 1

</llo_original>
